<compile_context>
chip_gen: v7x
topology: tpu7x:2x2x1
jax: 0.10.0
libtpu: 0.0.40
codegen_flags: <defaults>
</compile_context>

<pallas_src>
import functools

import jax
import jax.numpy as jnp
import numpy as np
from jax.experimental import pallas as pl
from jax.experimental.pallas import tpu as pltpu

_MIB = 1024 * 1024


def _round_up(v, m):
    return ((v + m - 1) // m) * m


def _vmem_capacity_bytes():
    """Physical per-core VMEM; falls back to the smallest current part (v7x, 64 MiB)."""
    try:
        cap = getattr(pltpu.get_tpu_info(), "vmem_capacity_bytes", None)
        if cap:
            return int(cap)
    except Exception:
        pass
    return 64 * _MIB


def _pick_batch_block(B, N, fin_p, fout_p, K, cd_bytes, carry_bytes, out_bytes, budget):
    """Largest tb (divisor of B) fitting the VMEM budget, preferring >=4 (then >=2) grid steps."""
    def vmem_needed(tb):
        invariants = N * N * cd_bytes + K * fin_p * fout_p * cd_bytes   # single-buffered L, W
        x_blk = 2 * N * tb * fin_p * cd_bytes                           # double-buffered input
        o_blk = 2 * N * tb * fout_p * out_bytes                         # double-buffered output
        scratch = N * tb * fin_p * carry_bytes + N * tb * fout_p * 4    # ax carry + f32 acc
        return invariants + x_blk + o_blk + scratch

    divisors = [d for d in range(1, B + 1) if B % d == 0]
    feasible = [d for d in divisors if vmem_needed(d) <= budget]
    if not feasible:
        return 1
    for min_steps in (4, 2, 1):   # prefer a real pipeline (and an even/megacore-splittable grid)
        cands = [d for d in feasible if B // d >= min_steps]
        if cands:
            return max(cands)
    return max(feasible)


def _dgc_kernel(L_ref, x_ref, w_ref, o_ref, ax_ref, acc_ref, *, k, tb, fin_p, fout_p):
    """One batch block of DynamicGraphConvolution.

    L_ref  : (N, N)              Laplacian, compute dtype (grid-invariant, single-buffered)
    x_ref  : (N, tb*Fin_p)       node features, batch folded into the lane axis
    w_ref  : (K, Fin_p, Fout_p)  softmax(fusion)-scaled GC weights (grid-invariant)
    o_ref  : (N, tb*Fout_p)      relu(sum_i adj_i @ x @ (w_i W_i)), batch on lanes
    ax_ref : (N, tb*Fin_p)       Chebyshev carry scratch (carry dtype)
    acc_ref: (N, tb*Fout_p)      f32 accumulator scratch
    """
    f32 = jnp.float32
    cd = L_ref.dtype                                   # MXU input dtype (bf16 or f32)

    ax_ref[...] = x_ref[...].astype(ax_ref.dtype)      # ax_0 = x
    acc_ref[...] = jnp.zeros_like(acc_ref)

    for i in range(k):                                 # K is small and static
        w_i = w_ref[i]                                 # (Fin_p, Fout_p)
        # Output stage interleaved with the recurrence: acc_b += ax_b @ (w_i W_i).
        # Fin_p / Fout_p are multiples of 128, so every lane slice is vreg-aligned.
        # TODO(synk): for very large tb switch this loop to lax.fori_loop + pl.ds, or fuse
        # the per-batch matmuls via a lanes->sublanes transpose (N < 128 case); with the
        # accumulator restructure almost nothing stays live across iterations here.
        for b in range(tb):
            xb = ax_ref[:, b * fin_p:(b + 1) * fin_p]
            acc_ref[:, b * fout_p:(b + 1) * fout_p] += jnp.dot(
                xb.astype(cd), w_i, preferred_element_type=f32)
        # Chebyshev recurrence for the next order: ax <- L @ ax (one wide MXU matmul).
        if i < k - 1:
            ax_ref[...] = jnp.dot(
                L_ref[...], ax_ref[...].astype(cd),
                preferred_element_type=f32).astype(ax_ref.dtype)

    o_ref[...] = jnp.maximum(acc_ref[...], 0.0).astype(o_ref.dtype)   # relu, one bulk store


def dynamic_graph_convolution(x, L, gc_weights, fusion, *,
                              compute_dtype=jnp.bfloat16,
                              carry_dtype=jnp.float32,
                              batch_block=None,
                              vmem_budget_bytes=None):
    """x: (B, N, Fin), L: (N, N), gc_weights: (K, Fin, Fout), fusion: (K,) -> (B, N, Fout)."""
    B, N, Fin = x.shape
    K, _, Fout = gc_weights.shape
    out_dtype = x.dtype

    fin_p = _round_up(Fin, 128)    # vreg-aligned per-batch lane slices + tileable batch
    fout_p = _round_up(Fout, 128)  # lane-dense (unmasked) output stores

    # Fold softmax(fusion) into the weights once (w_i*(A x W_i) == A x (w_i W_i));
    # zero-pad to (K, Fin_p, Fout_p) — padded rows/cols contribute exact zeros.
    wmix = jax.nn.softmax(fusion.astype(jnp.float32), axis=0)
    Wf = wmix[:, None, None] * gc_weights.astype(jnp.float32)
    Wf = jnp.pad(Wf, ((0, 0), (0, fin_p - Fin), (0, fout_p - Fout))).astype(compute_dtype)

    # Fold batch into lanes: (B, N, Fin) -> (N, B*Fin_p), zero-padding the feature axis.
    x_p = jnp.pad(x, ((0, 0), (0, 0), (0, fin_p - Fin)))
    x_flat = jnp.transpose(x_p, (1, 0, 2)).reshape(N, B * fin_p).astype(compute_dtype)
    Lc = L.astype(compute_dtype)

    # Per-generation VMEM budget -> batch tile size and explicit scoped-VMEM limit.
    cd_bytes = jnp.dtype(compute_dtype).itemsize
    carry_bytes = jnp.dtype(carry_dtype).itemsize
    out_bytes = jnp.dtype(out_dtype).itemsize
    cap = _vmem_capacity_bytes()
    budget = vmem_budget_bytes if vmem_budget_bytes is not None else min(cap // 2, 48 * _MIB)
    if batch_block is None:
        tb = _pick_batch_block(B, N, fin_p, fout_p, K,
                               cd_bytes, carry_bytes, out_bytes, budget)
    else:
        tb = int(batch_block)
        assert B % tb == 0, "batch_block must divide the batch size"
    grid = (B // tb,)
    vmem_limit = int(min(max(cap - 8 * _MIB, budget), budget + 16 * _MIB))

    kernel = functools.partial(_dgc_kernel, k=K, tb=tb, fin_p=fin_p, fout_p=fout_p)

    def run(single_buffer_invariants):
        inv = {"pipeline_mode": pl.Buffered(1)} if single_buffer_invariants else {}
        grid_spec = pltpu.PrefetchScalarGridSpec(
            num_scalar_prefetch=0,
            grid=grid,
            in_specs=[
                pl.BlockSpec((N, N), lambda b: (0, 0), **inv),                 # L (invariant)
                pl.BlockSpec((N, tb * fin_p), lambda b: (0, b)),               # x batch block
                pl.BlockSpec((K, fin_p, fout_p), lambda b: (0, 0, 0), **inv),  # W (invariant)
            ],
            out_specs=pl.BlockSpec((N, tb * fout_p), lambda b: (0, b)),
            scratch_shapes=[
                pltpu.VMEM((N, tb * fin_p), carry_dtype),      # Chebyshev carry
                pltpu.VMEM((N, tb * fout_p), jnp.float32),     # accumulator
            ],
        )
        return pl.pallas_call(
            kernel,
            out_shape=jax.ShapeDtypeStruct((N, B * fout_p), out_dtype),
            grid_spec=grid_spec,
            compiler_params=pltpu.CompilerParams(
                dimension_semantics=("parallel",),
                vmem_limit_bytes=vmem_limit),
        )(Lc, x_flat, Wf)

    try:
        out_flat = run(True)
    except Exception:
        # Fallback for JAX versions without BlockSpec(pipeline_mode=...): default buffering.
        out_flat = run(False)

    # (N, B*Fout_p) -> (B, N, Fout): restore batch-major layout and drop the lane padding.
    return jnp.transpose(out_flat.reshape(N, B, fout_p), (1, 0, 2))[:, :, :Fout]


def _reference(x, L, gc_weights, fusion):
    """Pure-JAX reference mirroring the PyTorch forward (high-precision matmuls)."""
    K = gc_weights.shape[0]
    N = L.shape[0]
    hp = jax.lax.Precision.HIGHEST
    Lf = L.astype(jnp.float32)
    adj = [jnp.eye(N, dtype=jnp.float32), Lf]
    for _ in range(2, K):
        adj.append(jnp.matmul(adj[-1], Lf, precision=hp))
    w = jax.nn.softmax(fusion.astype(jnp.float32), axis=0)
    result = 0.0
    for i in range(K):
        out_i = jnp.einsum("nm,bmf,fo->bno", adj[i], x.astype(jnp.float32),
                           gc_weights[i].astype(jnp.float32), precision=hp)
        result = result + w[i] * out_i
    return jax.nn.relu(result)


if __name__ == "__main__":
    key = jax.random.PRNGKey(0)
    B, N, Fin, Fout, K = 8, 16, 32, 32, 3

    k_x, k_L, k_w = jax.random.split(key, 3)
    x = jax.random.normal(k_x, (B, N, Fin), dtype=jnp.float32)
    L = jax.random.normal(k_L, (N, N), dtype=jnp.float32) / jnp.sqrt(N)

    # GraphConvolution weights (xavier_normal-style, no bias); fusion = ones(k)/k.
    xavier_std = (2.0 / (Fin + Fout)) ** 0.5
    gc_weights = jax.random.normal(k_w, (K, Fin, Fout), dtype=jnp.float32) * xavier_std
    fusion = jnp.ones((K,), dtype=jnp.float32) / K

    ref = _reference(x, L, gc_weights, fusion)

    # f32 MXU inputs, auto batch tiling (grid of B//tb >= 4 pipelined steps): tight check.
    out_f32 = jax.block_until_ready(
        dynamic_graph_convolution(x, L, gc_weights, fusion, compute_dtype=jnp.float32))
    np.testing.assert_allclose(np.asarray(out_f32), np.asarray(ref), rtol=1e-3, atol=1e-3)

    # Default bf16 MXU inputs (f32 accumulation / carry): loose check.
    out_bf16 = jax.block_until_ready(dynamic_graph_convolution(x, L, gc_weights, fusion))
    np.testing.assert_allclose(np.asarray(out_bf16), np.asarray(ref), rtol=8e-2, atol=8e-2)

    # Whole-batch block (grid of 1) edge case still works, e.g. when B is tiny.
    out_full = jax.block_until_ready(
        dynamic_graph_convolution(x, L, gc_weights, fusion,
                                  compute_dtype=jnp.float32, batch_block=B))
    np.testing.assert_allclose(np.asarray(out_full), np.asarray(ref), rtol=1e-3, atol=1e-3)

    print("KERNEL_OK")
</pallas_src>

<mosaic_0001>
module attributes {stable_mosaic.version = 11 : i64} {
  func.func @_dgc_kernel(%arg0: i32, %arg1: memref<16x16xf32, #tpu.memory_space<vmem>>, %arg2: memref<16x256xf32, #tpu.memory_space<vmem>>, %arg3: memref<3x128x128xf32, #tpu.memory_space<vmem>>, %arg4: memref<16x256xf32, #tpu.memory_space<vmem>>, %arg5: memref<16x256xf32, #tpu.memory_space<vmem>>, %arg6: memref<16x256xf32, #tpu.memory_space<vmem>>) attributes {dimension_semantics = [#tpu.dimension_semantics<parallel>], iteration_bounds = array<i64: 4>, scalar_prefetch = 0 : i64, scratch_operands = 2 : i64, tpu.core_type = #tpu.core_type<tc>, window_params = [{pipeline_mode = #tpu.pipeline_mode<synchronous>, transform_indices = @transform_0, window_bounds = array<i64: 16, 16>}, {transform_indices = @transform_1, window_bounds = array<i64: 16, 256>}, {pipeline_mode = #tpu.pipeline_mode<synchronous>, transform_indices = @transform_2, window_bounds = array<i64: 3, 128, 128>}, {transform_indices = @transform_3, window_bounds = array<i64: 16, 256>}]} {
    %c0 = arith.constant 0 : index
    %c0_0 = arith.constant 0 : index
    %0 = vector.load %arg2[%c0, %c0_0] : memref<16x256xf32, #tpu.memory_space<vmem>>, vector<16x256xf32>
    %c0_1 = arith.constant 0 : index
    %c0_2 = arith.constant 0 : index
    %1 = vector.load %arg5[%c0_1, %c0_2] : memref<16x256xf32, #tpu.memory_space<vmem>>, vector<16x256xf32>
    tpu.vector_store %arg5[%c0_1, %c0_2], %0 {strides = array<i32>} : memref<16x256xf32, #tpu.memory_space<vmem>>, vector<16x256xf32>,
    %cst = arith.constant 0.000000e+00 : f32
    %2 = vector.broadcast %cst : f32 to vector<16x256xf32>
    %c0_3 = arith.constant 0 : index
    %c0_4 = arith.constant 0 : index
    %3 = vector.load %arg6[%c0_3, %c0_4] : memref<16x256xf32, #tpu.memory_space<vmem>>, vector<16x256xf32>
    tpu.vector_store %arg6[%c0_3, %c0_4], %2 {strides = array<i32>} : memref<16x256xf32, #tpu.memory_space<vmem>>, vector<16x256xf32>,
    %c0_5 = arith.constant 0 : index
    %c0_6 = arith.constant 0 : index
    %c0_7 = arith.constant 0 : index
    %4 = vector.load %arg3[%c0_5, %c0_6, %c0_7] : memref<3x128x128xf32, #tpu.memory_space<vmem>>, vector<1x128x128xf32>
    %5 = vector.shape_cast %4 : vector<1x128x128xf32> to vector<128x128xf32>
    %c0_8 = arith.constant 0 : index
    %c0_9 = arith.constant 0 : index
    %6 = vector.load %arg5[%c0_8, %c0_9] : memref<16x256xf32, #tpu.memory_space<vmem>>, vector<16x128xf32>
    %c0_10 = arith.constant 0 : index
    %c0_11 = arith.constant 0 : index
    %7 = vector.load %arg6[%c0_10, %c0_11] : memref<16x256xf32, #tpu.memory_space<vmem>>, vector<16x128xf32>
    %cst_12 = arith.constant dense<0.000000e+00> : vector<16x128xf32>
    %8 = tpu.matmul %6, %5, %cst_12 {dimension_numbers = #tpu.dot_dimension_numbers<[1], [0], [0], [1], [0, 0, 1, 1], [], []>} : vector<16x128xf32>, vector<128x128xf32>, vector<16x128xf32> -> vector<16x128xf32>
    %9 = arith.addf %7, %8 : vector<16x128xf32>
    %c0_13 = arith.constant 0 : index
    %c0_14 = arith.constant 0 : index
    %10 = vector.load %arg6[%c0_13, %c0_14] : memref<16x256xf32, #tpu.memory_space<vmem>>, vector<16x128xf32>
    tpu.vector_store %arg6[%c0_13, %c0_14], %9 {strides = array<i32>} : memref<16x256xf32, #tpu.memory_space<vmem>>, vector<16x128xf32>,
    %c0_15 = arith.constant 0 : index
    %c128 = arith.constant 128 : index
    %11 = vector.load %arg5[%c0_15, %c128] : memref<16x256xf32, #tpu.memory_space<vmem>>, vector<16x128xf32>
    %c0_16 = arith.constant 0 : index
    %c128_17 = arith.constant 128 : index
    %12 = vector.load %arg6[%c0_16, %c128_17] : memref<16x256xf32, #tpu.memory_space<vmem>>, vector<16x128xf32>
    %cst_18 = arith.constant dense<0.000000e+00> : vector<16x128xf32>
    %13 = tpu.matmul %11, %5, %cst_18 {dimension_numbers = #tpu.dot_dimension_numbers<[1], [0], [0], [1], [0, 0, 1, 1], [], []>} : vector<16x128xf32>, vector<128x128xf32>, vector<16x128xf32> -> vector<16x128xf32>
    %14 = arith.addf %12, %13 : vector<16x128xf32>
    %c0_19 = arith.constant 0 : index
    %c128_20 = arith.constant 128 : index
    %15 = vector.load %arg6[%c0_19, %c128_20] : memref<16x256xf32, #tpu.memory_space<vmem>>, vector<16x128xf32>
    tpu.vector_store %arg6[%c0_19, %c128_20], %14 {strides = array<i32>} : memref<16x256xf32, #tpu.memory_space<vmem>>, vector<16x128xf32>,
    %c0_21 = arith.constant 0 : index
    %c0_22 = arith.constant 0 : index
    %16 = vector.load %arg1[%c0_21, %c0_22] : memref<16x16xf32, #tpu.memory_space<vmem>>, vector<16x16xf32>
    %c0_23 = arith.constant 0 : index
    %c0_24 = arith.constant 0 : index
    %17 = vector.load %arg5[%c0_23, %c0_24] : memref<16x256xf32, #tpu.memory_space<vmem>>, vector<16x256xf32>
    %cst_25 = arith.constant dense<0.000000e+00> : vector<16x256xf32>
    %18 = tpu.matmul %16, %17, %cst_25 {dimension_numbers = #tpu.dot_dimension_numbers<[1], [0], [0], [1], [0, 0, 1, 1], [], []>} : vector<16x16xf32>, vector<16x256xf32>, vector<16x256xf32> -> vector<16x256xf32>
    %c0_26 = arith.constant 0 : index
    %c0_27 = arith.constant 0 : index
    %19 = vector.load %arg5[%c0_26, %c0_27] : memref<16x256xf32, #tpu.memory_space<vmem>>, vector<16x256xf32>
    tpu.vector_store %arg5[%c0_26, %c0_27], %18 {strides = array<i32>} : memref<16x256xf32, #tpu.memory_space<vmem>>, vector<16x256xf32>,
    %c1 = arith.constant 1 : index
    %c0_28 = arith.constant 0 : index
    %c0_29 = arith.constant 0 : index
    %20 = vector.load %arg3[%c1, %c0_28, %c0_29] : memref<3x128x128xf32, #tpu.memory_space<vmem>>, vector<1x128x128xf32>
    %21 = vector.shape_cast %20 : vector<1x128x128xf32> to vector<128x128xf32>
    %c0_30 = arith.constant 0 : index
    %c0_31 = arith.constant 0 : index
    %22 = vector.load %arg5[%c0_30, %c0_31] : memref<16x256xf32, #tpu.memory_space<vmem>>, vector<16x128xf32>
    %c0_32 = arith.constant 0 : index
    %c0_33 = arith.constant 0 : index
    %23 = vector.load %arg6[%c0_32, %c0_33] : memref<16x256xf32, #tpu.memory_space<vmem>>, vector<16x128xf32>
    %cst_34 = arith.constant dense<0.000000e+00> : vector<16x128xf32>
    %24 = tpu.matmul %22, %21, %cst_34 {dimension_numbers = #tpu.dot_dimension_numbers<[1], [0], [0], [1], [0, 0, 1, 1], [], []>} : vector<16x128xf32>, vector<128x128xf32>, vector<16x128xf32> -> vector<16x128xf32>
    %25 = arith.addf %23, %24 : vector<16x128xf32>
    %c0_35 = arith.constant 0 : index
    %c0_36 = arith.constant 0 : index
    %26 = vector.load %arg6[%c0_35, %c0_36] : memref<16x256xf32, #tpu.memory_space<vmem>>, vector<16x128xf32>
    tpu.vector_store %arg6[%c0_35, %c0_36], %25 {strides = array<i32>} : memref<16x256xf32, #tpu.memory_space<vmem>>, vector<16x128xf32>,
    %c0_37 = arith.constant 0 : index
    %c128_38 = arith.constant 128 : index
    %27 = vector.load %arg5[%c0_37, %c128_38] : memref<16x256xf32, #tpu.memory_space<vmem>>, vector<16x128xf32>
    %c0_39 = arith.constant 0 : index
    %c128_40 = arith.constant 128 : index
    %28 = vector.load %arg6[%c0_39, %c128_40] : memref<16x256xf32, #tpu.memory_space<vmem>>, vector<16x128xf32>
    %cst_41 = arith.constant dense<0.000000e+00> : vector<16x128xf32>
    %29 = tpu.matmul %27, %21, %cst_41 {dimension_numbers = #tpu.dot_dimension_numbers<[1], [0], [0], [1], [0, 0, 1, 1], [], []>} : vector<16x128xf32>, vector<128x128xf32>, vector<16x128xf32> -> vector<16x128xf32>
    %30 = arith.addf %28, %29 : vector<16x128xf32>
    %c0_42 = arith.constant 0 : index
    %c128_43 = arith.constant 128 : index
    %31 = vector.load %arg6[%c0_42, %c128_43] : memref<16x256xf32, #tpu.memory_space<vmem>>, vector<16x128xf32>
    tpu.vector_store %arg6[%c0_42, %c128_43], %30 {strides = array<i32>} : memref<16x256xf32, #tpu.memory_space<vmem>>, vector<16x128xf32>,
    %c0_44 = arith.constant 0 : index
    %c0_45 = arith.constant 0 : index
    %32 = vector.load %arg1[%c0_44, %c0_45] : memref<16x16xf32, #tpu.memory_space<vmem>>, vector<16x16xf32>
    %c0_46 = arith.constant 0 : index
    %c0_47 = arith.constant 0 : index
    %33 = vector.load %arg5[%c0_46, %c0_47] : memref<16x256xf32, #tpu.memory_space<vmem>>, vector<16x256xf32>
    %cst_48 = arith.constant dense<0.000000e+00> : vector<16x256xf32>
    %34 = tpu.matmul %32, %33, %cst_48 {dimension_numbers = #tpu.dot_dimension_numbers<[1], [0], [0], [1], [0, 0, 1, 1], [], []>} : vector<16x16xf32>, vector<16x256xf32>, vector<16x256xf32> -> vector<16x256xf32>
    %c0_49 = arith.constant 0 : index
    %c0_50 = arith.constant 0 : index
    %35 = vector.load %arg5[%c0_49, %c0_50] : memref<16x256xf32, #tpu.memory_space<vmem>>, vector<16x256xf32>
    tpu.vector_store %arg5[%c0_49, %c0_50], %34 {strides = array<i32>} : memref<16x256xf32, #tpu.memory_space<vmem>>, vector<16x256xf32>,
    %c2 = arith.constant 2 : index
    %c0_51 = arith.constant 0 : index
    %c0_52 = arith.constant 0 : index
    %36 = vector.load %arg3[%c2, %c0_51, %c0_52] : memref<3x128x128xf32, #tpu.memory_space<vmem>>, vector<1x128x128xf32>
    %37 = vector.shape_cast %36 : vector<1x128x128xf32> to vector<128x128xf32>
    %c0_53 = arith.constant 0 : index
    %c0_54 = arith.constant 0 : index
    %38 = vector.load %arg5[%c0_53, %c0_54] : memref<16x256xf32, #tpu.memory_space<vmem>>, vector<16x128xf32>
    %c0_55 = arith.constant 0 : index
    %c0_56 = arith.constant 0 : index
    %39 = vector.load %arg6[%c0_55, %c0_56] : memref<16x256xf32, #tpu.memory_space<vmem>>, vector<16x128xf32>
    %cst_57 = arith.constant dense<0.000000e+00> : vector<16x128xf32>
    %40 = tpu.matmul %38, %37, %cst_57 {dimension_numbers = #tpu.dot_dimension_numbers<[1], [0], [0], [1], [0, 0, 1, 1], [], []>} : vector<16x128xf32>, vector<128x128xf32>, vector<16x128xf32> -> vector<16x128xf32>
    %41 = arith.addf %39, %40 : vector<16x128xf32>
    %c0_58 = arith.constant 0 : index
    %c0_59 = arith.constant 0 : index
    %42 = vector.load %arg6[%c0_58, %c0_59] : memref<16x256xf32, #tpu.memory_space<vmem>>, vector<16x128xf32>
    tpu.vector_store %arg6[%c0_58, %c0_59], %41 {strides = array<i32>} : memref<16x256xf32, #tpu.memory_space<vmem>>, vector<16x128xf32>,
    %c0_60 = arith.constant 0 : index
    %c128_61 = arith.constant 128 : index
    %43 = vector.load %arg5[%c0_60, %c128_61] : memref<16x256xf32, #tpu.memory_space<vmem>>, vector<16x128xf32>
    %c0_62 = arith.constant 0 : index
    %c128_63 = arith.constant 128 : index
    %44 = vector.load %arg6[%c0_62, %c128_63] : memref<16x256xf32, #tpu.memory_space<vmem>>, vector<16x128xf32>
    %cst_64 = arith.constant dense<0.000000e+00> : vector<16x128xf32>
    %45 = tpu.matmul %43, %37, %cst_64 {dimension_numbers = #tpu.dot_dimension_numbers<[1], [0], [0], [1], [0, 0, 1, 1], [], []>} : vector<16x128xf32>, vector<128x128xf32>, vector<16x128xf32> -> vector<16x128xf32>
    %46 = arith.addf %44, %45 : vector<16x128xf32>
    %c0_65 = arith.constant 0 : index
    %c128_66 = arith.constant 128 : index
    %47 = vector.load %arg6[%c0_65, %c128_66] : memref<16x256xf32, #tpu.memory_space<vmem>>, vector<16x128xf32>
    tpu.vector_store %arg6[%c0_65, %c128_66], %46 {strides = array<i32>} : memref<16x256xf32, #tpu.memory_space<vmem>>, vector<16x128xf32>,
    %c0_67 = arith.constant 0 : index
    %c0_68 = arith.constant 0 : index
    %48 = vector.load %arg6[%c0_67, %c0_68] : memref<16x256xf32, #tpu.memory_space<vmem>>, vector<16x256xf32>
    %cst_69 = arith.constant 0.000000e+00 : f32
    %49 = vector.broadcast %cst_69 : f32 to vector<16x256xf32>
    %50 = arith.maximumf %48, %49 : vector<16x256xf32>
    %c0_70 = arith.constant 0 : index
    %c0_71 = arith.constant 0 : index
    %51 = vector.load %arg4[%c0_70, %c0_71] : memref<16x256xf32, #tpu.memory_space<vmem>>, vector<16x256xf32>
    tpu.vector_store %arg4[%c0_70, %c0_71], %50 {strides = array<i32>} : memref<16x256xf32, #tpu.memory_space<vmem>>, vector<16x256xf32>,
    return
  }
  func.func @transform_0(%arg0: i32) -> (i32, i32) {
    %c0_i32 = arith.constant 0 : i32
    %c0_i32_0 = arith.constant 0 : i32
    %c0_i32_1 = arith.constant 0 : i32
    return %c0_i32, %c0_i32_0 : i32, i32
  }
  func.func @transform_1(%arg0: i32) -> (i32, i32) {
    %c0_i32 = arith.constant 0 : i32
    %c0_i32_0 = arith.constant 0 : i32
    return %c0_i32, %arg0 : i32, i32
  }
  func.func @transform_2(%arg0: i32) -> (i32, i32, i32) {
    %c0_i32 = arith.constant 0 : i32
    %c0_i32_0 = arith.constant 0 : i32
    %c0_i32_1 = arith.constant 0 : i32
    %c0_i32_2 = arith.constant 0 : i32
    return %c0_i32, %c0_i32_0, %c0_i32_1 : i32, i32, i32
  }
  func.func @transform_3(%arg0: i32) -> (i32, i32) {
    %c0_i32 = arith.constant 0 : i32
    %c0_i32_0 = arith.constant 0 : i32
    return %c0_i32, %arg0 : i32, i32
  }
}

module attributes {stable_mosaic.version = 11 : i64} {
  func.func @_dgc_kernel(%arg0: i32, %arg1: memref<16x16xf32, #tpu.memory_space<vmem>>, %arg2: memref<16x256xf32, #tpu.memory_space<vmem>>, %arg3: memref<3x128x128xf32, #tpu.memory_space<vmem>>, %arg4: memref<16x256xf32, #tpu.memory_space<vmem>>, %arg5: memref<16x256xf32, #tpu.memory_space<vmem>>, %arg6: memref<16x256xf32, #tpu.memory_space<vmem>>) attributes {dimension_semantics = [#tpu.dimension_semantics<parallel>], iteration_bounds = array<i64: 4>, scalar_prefetch = 0 : i64, scratch_operands = 2 : i64, tpu.core_type = #tpu.core_type<tc>, window_params = [{pipeline_mode = #tpu.pipeline_mode<synchronous>, transform_indices = @transform_0, window_bounds = array<i64: 16, 16>}, {transform_indices = @transform_1, window_bounds = array<i64: 16, 256>}, {pipeline_mode = #tpu.pipeline_mode<synchronous>, transform_indices = @transform_2, window_bounds = array<i64: 3, 128, 128>}, {transform_indices = @transform_3, window_bounds = array<i64: 16, 256>}]} {
    %c0 = arith.constant 0 : index
    %c0_0 = arith.constant 0 : index
    %0 = vector.load %arg2[%c0, %c0_0] : memref<16x256xf32, #tpu.memory_space<vmem>>, vector<16x256xf32>
    %c0_1 = arith.constant 0 : index
    %c0_2 = arith.constant 0 : index
    %1 = vector.load %arg5[%c0_1, %c0_2] : memref<16x256xf32, #tpu.memory_space<vmem>>, vector<16x256xf32>
    tpu.vector_store %arg5[%c0_1, %c0_2], %0 {strides = array<i32>} : memref<16x256xf32, #tpu.memory_space<vmem>>, vector<16x256xf32>,
    %cst = arith.constant 0.000000e+00 : f32
    %2 = vector.broadcast %cst : f32 to vector<16x256xf32>
    %c0_3 = arith.constant 0 : index
    %c0_4 = arith.constant 0 : index
    %3 = vector.load %arg6[%c0_3, %c0_4] : memref<16x256xf32, #tpu.memory_space<vmem>>, vector<16x256xf32>
    tpu.vector_store %arg6[%c0_3, %c0_4], %2 {strides = array<i32>} : memref<16x256xf32, #tpu.memory_space<vmem>>, vector<16x256xf32>,
    %c0_5 = arith.constant 0 : index
    %c0_6 = arith.constant 0 : index
    %c0_7 = arith.constant 0 : index
    %4 = vector.load %arg3[%c0_5, %c0_6, %c0_7] : memref<3x128x128xf32, #tpu.memory_space<vmem>>, vector<1x128x128xf32>
    %5 = vector.shape_cast %4 : vector<1x128x128xf32> to vector<128x128xf32>
    %c0_8 = arith.constant 0 : index
    %c0_9 = arith.constant 0 : index
    %6 = vector.load %arg5[%c0_8, %c0_9] : memref<16x256xf32, #tpu.memory_space<vmem>>, vector<16x128xf32>
    %c0_10 = arith.constant 0 : index
    %c0_11 = arith.constant 0 : index
    %7 = vector.load %arg6[%c0_10, %c0_11] : memref<16x256xf32, #tpu.memory_space<vmem>>, vector<16x128xf32>
    %cst_12 = arith.constant dense<0.000000e+00> : vector<16x128xf32>
    %8 = tpu.matmul %6, %5, %cst_12 {dimension_numbers = #tpu.dot_dimension_numbers<[1], [0], [0], [1], [0, 0, 1, 1], [], []>} : vector<16x128xf32>, vector<128x128xf32>, vector<16x128xf32> -> vector<16x128xf32>
    %9 = arith.addf %7, %8 : vector<16x128xf32>
    %c0_13 = arith.constant 0 : index
    %c0_14 = arith.constant 0 : index
    %10 = vector.load %arg6[%c0_13, %c0_14] : memref<16x256xf32, #tpu.memory_space<vmem>>, vector<16x128xf32>
    tpu.vector_store %arg6[%c0_13, %c0_14], %9 {strides = array<i32>} : memref<16x256xf32, #tpu.memory_space<vmem>>, vector<16x128xf32>,
    %c0_15 = arith.constant 0 : index
    %c128 = arith.constant 128 : index
    %11 = vector.load %arg5[%c0_15, %c128] : memref<16x256xf32, #tpu.memory_space<vmem>>, vector<16x128xf32>
    %c0_16 = arith.constant 0 : index
    %c128_17 = arith.constant 128 : index
    %12 = vector.load %arg6[%c0_16, %c128_17] : memref<16x256xf32, #tpu.memory_space<vmem>>, vector<16x128xf32>
    %cst_18 = arith.constant dense<0.000000e+00> : vector<16x128xf32>
    %13 = tpu.matmul %11, %5, %cst_18 {dimension_numbers = #tpu.dot_dimension_numbers<[1], [0], [0], [1], [0, 0, 1, 1], [], []>} : vector<16x128xf32>, vector<128x128xf32>, vector<16x128xf32> -> vector<16x128xf32>
    %14 = arith.addf %12, %13 : vector<16x128xf32>
    %c0_19 = arith.constant 0 : index
    %c128_20 = arith.constant 128 : index
    %15 = vector.load %arg6[%c0_19, %c128_20] : memref<16x256xf32, #tpu.memory_space<vmem>>, vector<16x128xf32>
    tpu.vector_store %arg6[%c0_19, %c128_20], %14 {strides = array<i32>} : memref<16x256xf32, #tpu.memory_space<vmem>>, vector<16x128xf32>,
    %c0_21 = arith.constant 0 : index
    %c0_22 = arith.constant 0 : index
    %16 = vector.load %arg1[%c0_21, %c0_22] : memref<16x16xf32, #tpu.memory_space<vmem>>, vector<16x16xf32>
    %c0_23 = arith.constant 0 : index
    %c0_24 = arith.constant 0 : index
    %17 = vector.load %arg5[%c0_23, %c0_24] : memref<16x256xf32, #tpu.memory_space<vmem>>, vector<16x256xf32>
    %cst_25 = arith.constant dense<0.000000e+00> : vector<16x256xf32>
    %18 = tpu.matmul %16, %17, %cst_25 {dimension_numbers = #tpu.dot_dimension_numbers<[1], [0], [0], [1], [0, 0, 1, 1], [], []>} : vector<16x16xf32>, vector<16x256xf32>, vector<16x256xf32> -> vector<16x256xf32>
    %c0_26 = arith.constant 0 : index
    %c0_27 = arith.constant 0 : index
    %19 = vector.load %arg5[%c0_26, %c0_27] : memref<16x256xf32, #tpu.memory_space<vmem>>, vector<16x256xf32>
    tpu.vector_store %arg5[%c0_26, %c0_27], %18 {strides = array<i32>} : memref<16x256xf32, #tpu.memory_space<vmem>>, vector<16x256xf32>,
    %c1 = arith.constant 1 : index
    %c0_28 = arith.constant 0 : index
    %c0_29 = arith.constant 0 : index
    %20 = vector.load %arg3[%c1, %c0_28, %c0_29] : memref<3x128x128xf32, #tpu.memory_space<vmem>>, vector<1x128x128xf32>
    %21 = vector.shape_cast %20 : vector<1x128x128xf32> to vector<128x128xf32>
    %c0_30 = arith.constant 0 : index
    %c0_31 = arith.constant 0 : index
    %22 = vector.load %arg5[%c0_30, %c0_31] : memref<16x256xf32, #tpu.memory_space<vmem>>, vector<16x128xf32>
    %c0_32 = arith.constant 0 : index
    %c0_33 = arith.constant 0 : index
    %23 = vector.load %arg6[%c0_32, %c0_33] : memref<16x256xf32, #tpu.memory_space<vmem>>, vector<16x128xf32>
    %cst_34 = arith.constant dense<0.000000e+00> : vector<16x128xf32>
    %24 = tpu.matmul %22, %21, %cst_34 {dimension_numbers = #tpu.dot_dimension_numbers<[1], [0], [0], [1], [0, 0, 1, 1], [], []>} : vector<16x128xf32>, vector<128x128xf32>, vector<16x128xf32> -> vector<16x128xf32>
    %25 = arith.addf %23, %24 : vector<16x128xf32>
    %c0_35 = arith.constant 0 : index
    %c0_36 = arith.constant 0 : index
    %26 = vector.load %arg6[%c0_35, %c0_36] : memref<16x256xf32, #tpu.memory_space<vmem>>, vector<16x128xf32>
    tpu.vector_store %arg6[%c0_35, %c0_36], %25 {strides = array<i32>} : memref<16x256xf32, #tpu.memory_space<vmem>>, vector<16x128xf32>,
    %c0_37 = arith.constant 0 : index
    %c128_38 = arith.constant 128 : index
    %27 = vector.load %arg5[%c0_37, %c128_38] : memref<16x256xf32, #tpu.memory_space<vmem>>, vector<16x128xf32>
    %c0_39 = arith.constant 0 : index
    %c128_40 = arith.constant 128 : index
    %28 = vector.load %arg6[%c0_39, %c128_40] : memref<16x256xf32, #tpu.memory_space<vmem>>, vector<16x128xf32>
    %cst_41 = arith.constant dense<0.000000e+00> : vector<16x128xf32>
    %29 = tpu.matmul %27, %21, %cst_41 {dimension_numbers = #tpu.dot_dimension_numbers<[1], [0], [0], [1], [0, 0, 1, 1], [], []>} : vector<16x128xf32>, vector<128x128xf32>, vector<16x128xf32> -> vector<16x128xf32>
    %30 = arith.addf %28, %29 : vector<16x128xf32>
    %c0_42 = arith.constant 0 : index
    %c128_43 = arith.constant 128 : index
    %31 = vector.load %arg6[%c0_42, %c128_43] : memref<16x256xf32, #tpu.memory_space<vmem>>, vector<16x128xf32>
    tpu.vector_store %arg6[%c0_42, %c128_43], %30 {strides = array<i32>} : memref<16x256xf32, #tpu.memory_space<vmem>>, vector<16x128xf32>,
    %c0_44 = arith.constant 0 : index
    %c0_45 = arith.constant 0 : index
    %32 = vector.load %arg1[%c0_44, %c0_45] : memref<16x16xf32, #tpu.memory_space<vmem>>, vector<16x16xf32>
    %c0_46 = arith.constant 0 : index
    %c0_47 = arith.constant 0 : index
    %33 = vector.load %arg5[%c0_46, %c0_47] : memref<16x256xf32, #tpu.memory_space<vmem>>, vector<16x256xf32>
    %cst_48 = arith.constant dense<0.000000e+00> : vector<16x256xf32>
    %34 = tpu.matmul %32, %33, %cst_48 {dimension_numbers = #tpu.dot_dimension_numbers<[1], [0], [0], [1], [0, 0, 1, 1], [], []>} : vector<16x16xf32>, vector<16x256xf32>, vector<16x256xf32> -> vector<16x256xf32>
    %c0_49 = arith.constant 0 : index
    %c0_50 = arith.constant 0 : index
    %35 = vector.load %arg5[%c0_49, %c0_50] : memref<16x256xf32, #tpu.memory_space<vmem>>, vector<16x256xf32>
    tpu.vector_store %arg5[%c0_49, %c0_50], %34 {strides = array<i32>} : memref<16x256xf32, #tpu.memory_space<vmem>>, vector<16x256xf32>,
    %c2 = arith.constant 2 : index
    %c0_51 = arith.constant 0 : index
    %c0_52 = arith.constant 0 : index
    %36 = vector.load %arg3[%c2, %c0_51, %c0_52] : memref<3x128x128xf32, #tpu.memory_space<vmem>>, vector<1x128x128xf32>
    %37 = vector.shape_cast %36 : vector<1x128x128xf32> to vector<128x128xf32>
    %c0_53 = arith.constant 0 : index
    %c0_54 = arith.constant 0 : index
    %38 = vector.load %arg5[%c0_53, %c0_54] : memref<16x256xf32, #tpu.memory_space<vmem>>, vector<16x128xf32>
    %c0_55 = arith.constant 0 : index
    %c0_56 = arith.constant 0 : index
    %39 = vector.load %arg6[%c0_55, %c0_56] : memref<16x256xf32, #tpu.memory_space<vmem>>, vector<16x128xf32>
    %cst_57 = arith.constant dense<0.000000e+00> : vector<16x128xf32>
    %40 = tpu.matmul %38, %37, %cst_57 {dimension_numbers = #tpu.dot_dimension_numbers<[1], [0], [0], [1], [0, 0, 1, 1], [], []>} : vector<16x128xf32>, vector<128x128xf32>, vector<16x128xf32> -> vector<16x128xf32>
    %41 = arith.addf %39, %40 : vector<16x128xf32>
    %c0_58 = arith.constant 0 : index
    %c0_59 = arith.constant 0 : index
    %42 = vector.load %arg6[%c0_58, %c0_59] : memref<16x256xf32, #tpu.memory_space<vmem>>, vector<16x128xf32>
    tpu.vector_store %arg6[%c0_58, %c0_59], %41 {strides = array<i32>} : memref<16x256xf32, #tpu.memory_space<vmem>>, vector<16x128xf32>,
    %c0_60 = arith.constant 0 : index
    %c128_61 = arith.constant 128 : index
    %43 = vector.load %arg5[%c0_60, %c128_61] : memref<16x256xf32, #tpu.memory_space<vmem>>, vector<16x128xf32>
    %c0_62 = arith.constant 0 : index
    %c128_63 = arith.constant 128 : index
    %44 = vector.load %arg6[%c0_62, %c128_63] : memref<16x256xf32, #tpu.memory_space<vmem>>, vector<16x128xf32>
    %cst_64 = arith.constant dense<0.000000e+00> : vector<16x128xf32>
    %45 = tpu.matmul %43, %37, %cst_64 {dimension_numbers = #tpu.dot_dimension_numbers<[1], [0], [0], [1], [0, 0, 1, 1], [], []>} : vector<16x128xf32>, vector<128x128xf32>, vector<16x128xf32> -> vector<16x128xf32>
    %46 = arith.addf %44, %45 : vector<16x128xf32>
    %c0_65 = arith.constant 0 : index
    %c128_66 = arith.constant 128 : index
    %47 = vector.load %arg6[%c0_65, %c128_66] : memref<16x256xf32, #tpu.memory_space<vmem>>, vector<16x128xf32>
    tpu.vector_store %arg6[%c0_65, %c128_66], %46 {strides = array<i32>} : memref<16x256xf32, #tpu.memory_space<vmem>>, vector<16x128xf32>,
    %c0_67 = arith.constant 0 : index
    %c0_68 = arith.constant 0 : index
    %48 = vector.load %arg6[%c0_67, %c0_68] : memref<16x256xf32, #tpu.memory_space<vmem>>, vector<16x256xf32>
    %cst_69 = arith.constant 0.000000e+00 : f32
    %49 = vector.broadcast %cst_69 : f32 to vector<16x256xf32>
    %50 = arith.maximumf %48, %49 : vector<16x256xf32>
    %c0_70 = arith.constant 0 : index
    %c0_71 = arith.constant 0 : index
    %51 = vector.load %arg4[%c0_70, %c0_71] : memref<16x256xf32, #tpu.memory_space<vmem>>, vector<16x256xf32>
    tpu.vector_store %arg4[%c0_70, %c0_71], %50 {strides = array<i32>} : memref<16x256xf32, #tpu.memory_space<vmem>>, vector<16x256xf32>,
    return
  }
  func.func @transform_0(%arg0: i32) -> (i32, i32) {
    %c0_i32 = arith.constant 0 : i32
    %c0_i32_0 = arith.constant 0 : i32
    %c0_i32_1 = arith.constant 0 : i32
    return %c0_i32, %c0_i32_0 : i32, i32
  }
  func.func @transform_1(%arg0: i32) -> (i32, i32) {
    %c0_i32 = arith.constant 0 : i32
    %c0_i32_0 = arith.constant 0 : i32
    return %c0_i32, %arg0 : i32, i32
  }
  func.func @transform_2(%arg0: i32) -> (i32, i32, i32) {
    %c0_i32 = arith.constant 0 : i32
    %c0_i32_0 = arith.constant 0 : i32
    %c0_i32_1 = arith.constant 0 : i32
    %c0_i32_2 = arith.constant 0 : i32
    return %c0_i32, %c0_i32_0, %c0_i32_1 : i32, i32, i32
  }
  func.func @transform_3(%arg0: i32) -> (i32, i32) {
    %c0_i32 = arith.constant 0 : i32
    %c0_i32_0 = arith.constant 0 : i32
    return %c0_i32, %arg0 : i32, i32
  }
}

</mosaic_0001>

<llo_original>
// kernel: tpu_custom_call.1
$region0: #{tpu_custom_call.1}
  #allocation0 [shape = 'u32[]', space=smem, size = 0x4, offset = 0x4, fixed_abs, tag = 'smem constant byte address 0x4 - core index']
  #allocation1 [shape = 'u32[144,128]{1,0:T(1,128)}', space=vmem, size = 0x12000, scoped, tag = 'internal scratch']
  #allocation2 [shape = 'f32[16,256]{1,0:T(8,128)}', space=vmem, size = 0x4000, scoped, tag = 'scratch operand']
  #allocation3 [shape = 'f32[16,256]{1,0:T(8,128)}', space=vmem, size = 0x4000, scoped, tag = 'scratch operand']
  %s0 = inlined_call_operand.hbm [shape: f32[16,16], index: 0, kind: input, shape index: {}]
  %s1 = inlined_call_operand.hbm [shape: f32[16,1024], index: 1, kind: input, shape index: {}]
  %s2 = inlined_call_operand.hbm [shape: f32[3,128,128], index: 2, kind: input, shape index: {}]
  %s3 = inlined_call_operand.hbm [shape: f32[16,1024], index: 3, kind: output, shape index: {}]
  %s4 = sld [smem:[#allocation0]]
  $region57: #{tpu_custom_call.1} parent=0
    _
  %s6 = ssub.s32 1, %s4
  %s7 = scalar_select 0, %s6, %s4
  $region1: #{tpu_custom_call.1} parent=0
    #allocation4 [shape = 'u8[8192]{0}', space=vmem, size = 0x2000, scoped, tag = 'input window, operand 0, single buffered']
    #allocation5 [shape = 's32[2]{0}', space=sflag, size = 0x8, scoped, tag = 'scoped memory for tpu_custom_call.1']
    #allocation6 [shape = 's32[2]{0}', space=sflag, size = 0x8, scoped, tag = 'scoped memory for tpu_custom_call.1']
    #allocation7 [shape = 'u8[32768]{0}', space=vmem, size = 0x8000, scoped, tag = 'input window, operand 1']
    #allocation8 [shape = 's32[2]{0}', space=sflag, size = 0x8, scoped, tag = 'scoped memory for tpu_custom_call.1']
    #allocation9 [shape = 'u8[196608]{0}', space=vmem, size = 0x30000, scoped, tag = 'input window, operand 2, single buffered']
    #allocation10 [shape = 'u8[32768]{0}', space=vmem, size = 0x8000, scoped, tag = 'output window, operand 0']
    %8 = vsyncpa [#allocation5], 0
    %9 = vsyncpa [#allocation8], 0
    %s10 = scalar_lea.sflag [#allocation8], 1
    %11 = vsyncpa %s10, 0
    %12 = vsyncpa [#allocation6], 0
    %s13 = scalar_lea.sflag [#allocation6], 1
    %14 = vsyncpa %s13, 0
    loop: start=0, step=1, limit=6
    $region2: #{tpu_custom_call.1} parent=1 // loop_pre_header
      _
    $region3: #{tpu_custom_call.1} parent=1 // loop_header
      %s16 = sphi 0, %s20
      %p17 = scmp.ge.s32.totalorder %s16, 6
      %s24 = sphi 0, %s24
      %s26 = sphi 0, %s24
      %s27 = sphi 0, %s26
      %s41 = sphi 0, %s27
      %s47 = sphi 0, %s49
      %s50 = sphi 0, %s47
      %s51 = sphi 0, %s50
      %s67 = sphi 0, %s51
      %s71 = sphi 0, %s71
      %s73 = sphi 0, %s71
      %s74 = sphi 0, %s73
      %s88 = sphi 0, %s74
      %s94 = sphi 0, %s96
      %s97 = sphi 0, %s94
      %s98 = sphi 0, %s97
      %s114 = sphi 0, %s98
    $region4: #{tpu_custom_call.1} parent=1 // loop_header_branch
      %19 = sbr.rel (%p17) target = $region8
    $region5: #{tpu_custom_call.1} parent=1 // loop_body
      %s21 = ssub.s32 %s16, 1
      %s22 = ssub.s32 %s16, 2
      %s23 = sadd.s32 %s16, 1
      %s25 = sadd.s32 %s24, 1
      %p28 = scmp.eq.s32.totalorder %s16, 3
      %p29 = scmp.ne.s32.totalorder %s24, %s26
      %p30 = scmp.eq.s32.totalorder %s16, 0
      %p31 = por %p29, %p30
      %p32 = scmp.ne.s32.totalorder %s24, %s26
      %p33 = scmp.eq.s32.totalorder %s21, 3
      %p34 = por %p32, %p33
      %p35 = scmp.ne.s32.totalorder %s26, %s27
      %p36 = scmp.eq.s32.totalorder %s21, 0
      %p37 = por %p35, %p36
      %p38 = scmp.ne.s32.totalorder %s26, %s27
      %p39 = scmp.eq.s32.totalorder %s22, 3
      %p40 = por %p38, %p39
      %p42 = scmp.ne.s32.totalorder %s27, %s41
      %p43 = scmp.eq.s32.totalorder %s22, 0
      %p44 = por %p42, %p43
      %s45 = ssub.s32 %s16, %s23
      %p46 = scmp.eq.s32.totalorder %s45, 0
      %s48 = sadd.s32 %s47, 1
      %s49 = scalar_select %p46, %s47, %s48
      %p52 = pneg %p46
      %p53 = scmp.eq.s32.totalorder %s16, 3
      %p54 = por %p52, %p53
      %p55 = scmp.ne.s32.totalorder %s47, %s50
      %p56 = scmp.eq.s32.totalorder %s16, 0
      %p57 = por %p55, %p56
      %p58 = scmp.ne.s32.totalorder %s47, %s50
      %p59 = scmp.eq.s32.totalorder %s21, 3
      %p60 = por %p58, %p59
      %p61 = scmp.ne.s32.totalorder %s50, %s51
      %p62 = scmp.eq.s32.totalorder %s21, 0
      %p63 = por %p61, %p62
      %p64 = scmp.ne.s32.totalorder %s50, %s51
      %p65 = scmp.eq.s32.totalorder %s22, 3
      %p66 = por %p64, %p65
      %p68 = scmp.ne.s32.totalorder %s51, %s67
      %p69 = scmp.eq.s32.totalorder %s22, 0
      %p70 = por %p68, %p69
      %s72 = sadd.s32 %s71, 1
      %p75 = scmp.eq.s32.totalorder %s16, 3
      %p76 = scmp.ne.s32.totalorder %s71, %s73
      %p77 = scmp.eq.s32.totalorder %s16, 0
      %p78 = por %p76, %p77
      %p79 = scmp.ne.s32.totalorder %s71, %s73
      %p80 = scmp.eq.s32.totalorder %s21, 3
      %p81 = por %p79, %p80
      %p82 = scmp.ne.s32.totalorder %s73, %s74
      %p83 = scmp.eq.s32.totalorder %s21, 0
      %p84 = por %p82, %p83
      %p85 = scmp.ne.s32.totalorder %s73, %s74
      %p86 = scmp.eq.s32.totalorder %s22, 3
      %p87 = por %p85, %p86
      %p89 = scmp.ne.s32.totalorder %s74, %s88
      %p90 = scmp.eq.s32.totalorder %s22, 0
      %p91 = por %p89, %p90
      %s92 = ssub.s32 %s16, %s23
      %p93 = scmp.eq.s32.totalorder %s92, 0
      %s95 = sadd.s32 %s94, 1
      %s96 = scalar_select %p93, %s94, %s95
      %p99 = pneg %p93
      %p100 = scmp.eq.s32.totalorder %s16, 3
      %p101 = por %p99, %p100
      %p102 = scmp.ne.s32.totalorder %s94, %s97
      %p103 = scmp.eq.s32.totalorder %s16, 0
      %p104 = por %p102, %p103
      %p105 = scmp.ne.s32.totalorder %s94, %s97
      %p106 = scmp.eq.s32.totalorder %s21, 3
      %p107 = por %p105, %p106
      %p108 = scmp.ne.s32.totalorder %s97, %s98
      %p109 = scmp.eq.s32.totalorder %s21, 0
      %p110 = por %p108, %p109
      %p111 = scmp.ne.s32.totalorder %s97, %s98
      %p112 = scmp.eq.s32.totalorder %s22, 3
      %p113 = por %p111, %p112
      %p115 = scmp.ne.s32.totalorder %s98, %s114
      %p116 = scmp.eq.s32.totalorder %s22, 0
      %p117 = por %p115, %p116
      %p118 = scmp.le.s32.totalorder 1, %s16
      %p119 = scmp.lt.s32.totalorder %s16, 5
      %p120 = pnand %p118, %p119
      %p121 = pneg %p120
      // Predicated region
      $region9: #{tpu_custom_call.1} parent=5 // pred_check
        _
      $region10: #{tpu_custom_call.1} parent=5 // pred_check_branch
        %123 = sbr.rel (%p120) target = $region12
      $region11: #{tpu_custom_call.1} parent=5 // pred_region
        %s124 = ssub.s32 %s16, 1
        // Predicated region
        $region13: #{tpu_custom_call.1} parent=11 // pred_check
          %p125 = pneg %p37
        $region14: #{tpu_custom_call.1} parent=11 // pred_check_branch
          %127 = sbr.rel (%p125) target = $region16
        $region15: #{tpu_custom_call.1} parent=11 // pred_region
          %s129 = ssub.s32 256, 256
          %130 = vsyncadd [#allocation5], %s129
          %s131 = sshll.u32 [#allocation4], 4
          %s132 = int_to_ptr.vmem [resolvable:$true] %s131
          %137 = dma.hbm_to_vmem [thread:$0]  %s0, 256, %s132, [#allocation5], 128, 128, 8
        $region16: #{tpu_custom_call.1} parent=11 // pred_fallthru
          _
        // Predicated region
        $region17: #{tpu_custom_call.1} parent=11 // pred_check
          %p138 = pneg %p84
        $region18: #{tpu_custom_call.1} parent=11 // pred_check_branch
          %140 = sbr.rel (%p138) target = $region20
        $region19: #{tpu_custom_call.1} parent=11 // pred_region
          %s142 = ssub.s32 6144, 6144
          %143 = vsyncadd [#allocation8], %s142
          %s144 = sshll.u32 [#allocation9], 4
          %s145 = int_to_ptr.vmem [resolvable:$true] %s144
          %150 = dma.hbm_to_vmem [thread:$0]  %s2, 6144, %s145, [#allocation8], 128, 128, 8
        $region20: #{tpu_custom_call.1} parent=11 // pred_fallthru
          _
      $region12: #{tpu_custom_call.1} parent=5 // pred_fallthru
        _
      %p151 = scmp.lt.s32.totalorder %s16, 4
      // Predicated region
      $region21: #{tpu_custom_call.1} parent=5 // pred_check
        %p152 = pneg %p151
      $region22: #{tpu_custom_call.1} parent=5 // pred_check_branch
        %154 = sbr.rel (%p152) target = $region24
      $region23: #{tpu_custom_call.1} parent=5 // pred_region
        // Predicated region
        $region25: #{tpu_custom_call.1} parent=23 // pred_check
          %p155 = pneg %p57
        $region26: #{tpu_custom_call.1} parent=23 // pred_check_branch
          %157 = sbr.rel (%p155) target = $region28
        $region27: #{tpu_custom_call.1} parent=23 // pred_region
          %s158 = sand.u32 %s16, 1
          %s159 = scalar_lea.sflag [#allocation8], %s158
          %s160 = sand.u32 %s47, 1
          %s161 = smul.addr %s160, 32
          %s162 = scalar_lea.vmem [#allocation7], %s161
          %s163 = smul.u32 2, %s16
          %s165 = ssub.s32 512, 512
          %166 = vsyncadd %s159, %s165
          %s167 = smul.addr %s163, 128
          %s168 = scalar_lea.hbm %s1, %s167
          %s169 = sshll.u32 %s162, 4
          %s170 = int_to_ptr.vmem [resolvable:$true] %s169
          %175 = dma.hbm_to_vmem [thread:$0]  %s168, 512, %s170, %s159, 1024, 256, 16
        $region28: #{tpu_custom_call.1} parent=23 // pred_fallthru
          _
      $region24: #{tpu_custom_call.1} parent=5 // pred_fallthru
        _
      %p176 = scmp.le.s32.totalorder 1, %s16
      %p177 = scmp.lt.s32.totalorder %s16, 5
      %p178 = pnand %p176, %p177
      %p179 = pneg %p178
      // Predicated region
      $region29: #{tpu_custom_call.1} parent=5 // pred_check
        _
      $region30: #{tpu_custom_call.1} parent=5 // pred_check_branch
        %181 = sbr.rel (%p178) target = $region32
      $region31: #{tpu_custom_call.1} parent=5 // pred_region
        %s182 = ssub.s32 %s16, 1
        // Predicated region
        $region33: #{tpu_custom_call.1} parent=31 // pred_check
          %p183 = pneg %p37
        $region34: #{tpu_custom_call.1} parent=31 // pred_check_branch
          %185 = sbr.rel (%p183) target = $region36
        $region35: #{tpu_custom_call.1} parent=31 // pred_region
          %186 = dma.done [#allocation5], 256
        $region36: #{tpu_custom_call.1} parent=31 // pred_fallthru
          _
        %s187 = sand.u32 %s21, 1
        %s188 = scalar_lea.sflag [#allocation8], %s187
        %s189 = sand.u32 %s50, 1
        %s190 = smul.addr %s189, 32
        %s191 = scalar_lea.vmem [#allocation7], %s190
        // Predicated region
        $region37: #{tpu_custom_call.1} parent=31 // pred_check
          %p192 = pneg %p63
        $region38: #{tpu_custom_call.1} parent=31 // pred_check_branch
          %194 = sbr.rel (%p192) target = $region40
        $region39: #{tpu_custom_call.1} parent=31 // pred_region
          %195 = dma.done %s188, 512
        $region40: #{tpu_custom_call.1} parent=31 // pred_fallthru
          _
        // Predicated region
        $region41: #{tpu_custom_call.1} parent=31 // pred_check
          %p196 = pneg %p84
        $region42: #{tpu_custom_call.1} parent=31 // pred_check_branch
          %198 = sbr.rel (%p196) target = $region44
        $region43: #{tpu_custom_call.1} parent=31 // pred_region
          %199 = dma.done [#allocation8], 6144
        $region44: #{tpu_custom_call.1} parent=31 // pred_fallthru
          _
        %p200 = pneg %p37
        %p201 = pneg %p34
        %s202 = sand.u32 %s21, 1
        %s203 = scalar_lea.sflag [#allocation8], %s202
        %s204 = sand.u32 %s50, 1
        %s205 = smul.addr %s204, 32
        %s206 = scalar_lea.vmem [#allocation7], %s205
        %p207 = pneg %p63
        %p208 = pneg %p60
        %p209 = pneg %p84
        %p210 = pneg %p81
        %p211 = pneg %p110
        %p212 = pneg %p107
        %s213 = sand.u32 %s97, 1
        %s214 = scalar_lea.sflag [#allocation6], %s213
        %s215 = sand.u32 %s97, 1
        %s216 = smul.addr %s215, 32
        %s217 = scalar_lea.vmem [#allocation10], %s216
        %s218 = smul.u32 2, %s21
        %s219 = smul.u32 2, %s21
        %v220 = vld [vmem:[%s191] sm:$0xff]
        %v221 = vld [vmem:[%s191 + $0x8] sm:$0xff]
        %v222 = vld [vmem:[%s191 + $0x10] sm:$0xff]
        %v223 = vld [vmem:[%s191 + $0x18] sm:$0xff]
        %224 = vst [vmem:[#allocation2] sm:$0xff] %v220
        %225 = vst [vmem:[#allocation2 + $0x8] sm:$0xff] %v221
        %226 = vst [vmem:[#allocation2 + $0x10] sm:$0xff] %v222
        %227 = vst [vmem:[#allocation2 + $0x18] sm:$0xff] %v223
        %228 = vst [vmem:[#allocation3] sm:$0xff] 0.0
        %229 = vst [vmem:[#allocation3 + $0x8] sm:$0xff] 0.0
        %230 = vst [vmem:[#allocation3 + $0x10] sm:$0xff] 0.0
        %231 = vst [vmem:[#allocation3 + $0x18] sm:$0xff] 0.0
        %v232 = vld [vmem:[#allocation9] sm:$0xff]
        %v233 = vld [vmem:[#allocation9 + $0x8] sm:$0xff]
        %v234 = vld [vmem:[#allocation9 + $0x10] sm:$0xff]
        %v235 = vld [vmem:[#allocation9 + $0x18] sm:$0xff]
        %v236 = vld [vmem:[#allocation9 + $0x20] sm:$0xff]
        %v237 = vld [vmem:[#allocation9 + $0x28] sm:$0xff]
        %v238 = vld [vmem:[#allocation9 + $0x30] sm:$0xff]
        %v239 = vld [vmem:[#allocation9 + $0x38] sm:$0xff]
        %v240 = vld [vmem:[#allocation9 + $0x40] sm:$0xff]
        %v241 = vld [vmem:[#allocation9 + $0x48] sm:$0xff]
        %v242 = vld [vmem:[#allocation9 + $0x50] sm:$0xff]
        %v243 = vld [vmem:[#allocation9 + $0x58] sm:$0xff]
        %v244 = vld [vmem:[#allocation9 + $0x60] sm:$0xff]
        %v245 = vld [vmem:[#allocation9 + $0x68] sm:$0xff]
        %v246 = vld [vmem:[#allocation9 + $0x70] sm:$0xff]
        %v247 = vld [vmem:[#allocation9 + $0x78] sm:$0xff]
        %v248 = vld [vmem:[#allocation2] sm:$0xff]
        %v249 = vld [vmem:[#allocation2 + $0x10] sm:$0xff]
        %v250 = vld [vmem:[#allocation3] sm:$0xff]
        %v251 = vld [vmem:[#allocation3 + $0x10] sm:$0xff]
        %252 = vmatprep.subr.mxu0 0.0
        %253 = vmatpush1.msra.mxu0 %v232
        %254 = vmatprep.subr.mxu0 0.0
        %255 = vmatpush1.msra.mxu0 %v233
        %256 = vmatprep.subr.mxu0 0.0
        %257 = vmatpush1.msra.mxu0 %v234
        %258 = vmatprep.subr.mxu0 0.0
        %259 = vmatpush1.msra.mxu0 %v235
        %260 = vmatprep.subr.mxu0 0.0
        %261 = vmatpush1.msra.mxu0 %v236
        %262 = vmatprep.subr.mxu0 0.0
        %263 = vmatpush1.msra.mxu0 %v237
        %264 = vmatprep.subr.mxu0 0.0
        %265 = vmatpush1.msra.mxu0 %v238
        %266 = vmatprep.subr.mxu0 0.0
        %267 = vmatpush1.msra.mxu0 %v239
        %268 = vmatprep.subr.mxu0 0.0
        %269 = vmatpush1.msra.mxu0 %v240
        %270 = vmatprep.subr.mxu0 0.0
        %271 = vmatpush1.msra.mxu0 %v241
        %272 = vmatprep.subr.mxu0 0.0
        %273 = vmatpush1.msra.mxu0 %v242
        %274 = vmatprep.subr.mxu0 0.0
        %275 = vmatpush1.msra.mxu0 %v243
        %276 = vmatprep.subr.mxu0 0.0
        %277 = vmatpush1.msra.mxu0 %v244
        %278 = vmatprep.subr.mxu0 0.0
        %279 = vmatpush1.msra.mxu0 %v245
        %280 = vmatprep.subr.mxu0 0.0
        %281 = vmatpush1.msra.mxu0 %v246
        %282 = vmatprep.subr.mxu0 0.0
        %283 = vmatpush1.msra.mxu0 %v247
        %284 = vmatprep.subr.mxu0 0.0
        %285 = vmatpush1.msra.mxu0 0.0
        %286 = vmatprep.subr.mxu0 0.0
        %287 = vmatpush1.msra.mxu0 0.0
        %288 = vmatprep.subr.mxu0 0.0
        %289 = vmatpush1.msra.mxu0 0.0
        %290 = vmatprep.subr.mxu0 0.0
        %291 = vmatpush1.msra.mxu0 0.0
        %292 = vmatprep.subr.mxu0 0.0
        %293 = vmatpush1.msra.mxu0 0.0
        %294 = vmatprep.subr.mxu0 0.0
        %295 = vmatpush1.msra.mxu0 0.0
        %296 = vmatprep.subr.mxu0 0.0
        %297 = vmatpush1.msra.mxu0 0.0
        %298 = vmatprep.subr.mxu0 0.0
        %299 = vmatpush1.msra.mxu0 0.0
        %300 = vmatprep.subr.mxu0 0.0
        %301 = vmatpush1.msra.mxu0 0.0
        %302 = vmatprep.subr.mxu0 0.0
        %303 = vmatpush1.msra.mxu0 0.0
        %304 = vmatprep.subr.mxu0 0.0
        %305 = vmatpush1.msra.mxu0 0.0
        %306 = vmatprep.subr.mxu0 0.0
        %307 = vmatpush1.msra.mxu0 0.0
        %308 = vmatprep.subr.mxu0 0.0
        %309 = vmatpush1.msra.mxu0 0.0
        %310 = vmatprep.subr.mxu0 0.0
        %311 = vmatpush1.msra.mxu0 0.0
        %312 = vmatprep.subr.mxu0 0.0
        %313 = vmatpush1.msra.mxu0 0.0
        %314 = vmatprep.subr.mxu0 0.0
        %315 = vmatpush1.msra.mxu0 0.0
        %316 = vmatprep.mubr.f32.mxu0 0.0
        %317 = vmatmul.mubr.f32.gmra.mrb[0].mxu0 %v248
        %v318 = vpop.f32.mrb[0].mxu0
        %v319 = vadd.f32 0.0, %v318
        %v320 = vpop.f32.mrb[0].mxu0
        %321 = vmatprep.mubr.f32.mxu0 0.0
        %322 = vmatmul.mubr.f32.gmra.mrb[0].mxu0 %v249
        %v323 = vpop.f32.mrb[0].mxu0
        %v324 = vadd.f32 0.0, %v323
        %v325 = vpop.f32.mrb[0].mxu0
        %326 = vdwg.mxu0
        %v327 = vadd.f32 %v250, %v319
        %v328 = vadd.f32 %v251, %v324
        %329 = vst [vmem:[#allocation3] sm:$0xff] %v327
        %330 = vst [vmem:[#allocation3 + $0x10] sm:$0xff] %v328
        %v331 = vld [vmem:[#allocation2 + $0x8] sm:$0xff]
        %v332 = vld [vmem:[#allocation2 + $0x18] sm:$0xff]
        %v333 = vld [vmem:[#allocation3 + $0x8] sm:$0xff]
        %v334 = vld [vmem:[#allocation3 + $0x18] sm:$0xff]
        %335 = vmatprep.subr.mxu0 0.0
        %336 = vmatpush1.msra.mxu0 %v232
        %337 = vmatprep.subr.mxu0 0.0
        %338 = vmatpush1.msra.mxu0 %v233
        %339 = vmatprep.subr.mxu0 0.0
        %340 = vmatpush1.msra.mxu0 %v234
        %341 = vmatprep.subr.mxu0 0.0
        %342 = vmatpush1.msra.mxu0 %v235
        %343 = vmatprep.subr.mxu0 0.0
        %344 = vmatpush1.msra.mxu0 %v236
        %345 = vmatprep.subr.mxu0 0.0
        %346 = vmatpush1.msra.mxu0 %v237
        %347 = vmatprep.subr.mxu0 0.0
        %348 = vmatpush1.msra.mxu0 %v238
        %349 = vmatprep.subr.mxu0 0.0
        %350 = vmatpush1.msra.mxu0 %v239
        %351 = vmatprep.subr.mxu0 0.0
        %352 = vmatpush1.msra.mxu0 %v240
        %353 = vmatprep.subr.mxu0 0.0
        %354 = vmatpush1.msra.mxu0 %v241
        %355 = vmatprep.subr.mxu0 0.0
        %356 = vmatpush1.msra.mxu0 %v242
        %357 = vmatprep.subr.mxu0 0.0
        %358 = vmatpush1.msra.mxu0 %v243
        %359 = vmatprep.subr.mxu0 0.0
        %360 = vmatpush1.msra.mxu0 %v244
        %361 = vmatprep.subr.mxu0 0.0
        %362 = vmatpush1.msra.mxu0 %v245
        %363 = vmatprep.subr.mxu0 0.0
        %364 = vmatpush1.msra.mxu0 %v246
        %365 = vmatprep.subr.mxu0 0.0
        %366 = vmatpush1.msra.mxu0 %v247
        %367 = vmatprep.subr.mxu0 0.0
        %368 = vmatpush1.msra.mxu0 0.0
        %369 = vmatprep.subr.mxu0 0.0
        %370 = vmatpush1.msra.mxu0 0.0
        %371 = vmatprep.subr.mxu0 0.0
        %372 = vmatpush1.msra.mxu0 0.0
        %373 = vmatprep.subr.mxu0 0.0
        %374 = vmatpush1.msra.mxu0 0.0
        %375 = vmatprep.subr.mxu0 0.0
        %376 = vmatpush1.msra.mxu0 0.0
        %377 = vmatprep.subr.mxu0 0.0
        %378 = vmatpush1.msra.mxu0 0.0
        %379 = vmatprep.subr.mxu0 0.0
        %380 = vmatpush1.msra.mxu0 0.0
        %381 = vmatprep.subr.mxu0 0.0
        %382 = vmatpush1.msra.mxu0 0.0
        %383 = vmatprep.subr.mxu0 0.0
        %384 = vmatpush1.msra.mxu0 0.0
        %385 = vmatprep.subr.mxu0 0.0
        %386 = vmatpush1.msra.mxu0 0.0
        %387 = vmatprep.subr.mxu0 0.0
        %388 = vmatpush1.msra.mxu0 0.0
        %389 = vmatprep.subr.mxu0 0.0
        %390 = vmatpush1.msra.mxu0 0.0
        %391 = vmatprep.subr.mxu0 0.0
        %392 = vmatpush1.msra.mxu0 0.0
        %393 = vmatprep.subr.mxu0 0.0
        %394 = vmatpush1.msra.mxu0 0.0
        %395 = vmatprep.subr.mxu0 0.0
        %396 = vmatpush1.msra.mxu0 0.0
        %397 = vmatprep.subr.mxu0 0.0
        %398 = vmatpush1.msra.mxu0 0.0
        %399 = vmatprep.mubr.f32.mxu0 0.0
        %400 = vmatmul.mubr.f32.gmra.mrb[0].mxu0 %v331
        %v401 = vpop.f32.mrb[0].mxu0
        %v402 = vadd.f32 0.0, %v401
        %v403 = vpop.f32.mrb[0].mxu0
        %404 = vmatprep.mubr.f32.mxu0 0.0
        %405 = vmatmul.mubr.f32.gmra.mrb[0].mxu0 %v332
        %v406 = vpop.f32.mrb[0].mxu0
        %v407 = vadd.f32 0.0, %v406
        %v408 = vpop.f32.mrb[0].mxu0
        %409 = vdwg.mxu0
        %v410 = vadd.f32 %v333, %v402
        %v411 = vadd.f32 %v334, %v407
        %412 = vst [vmem:[#allocation3 + $0x8] sm:$0xff] %v410
        %413 = vst [vmem:[#allocation3 + $0x18] sm:$0xff] %v411
        %v414 = vld [vmem:[#allocation4] sm:$0xff]
        %v415 = vld [vmem:[#allocation4 + $0x8] sm:$0xff]
        %v416 = vld [vmem:[#allocation2] sm:$0xff]
        %v417 = vld [vmem:[#allocation2 + $0x8] sm:$0xff]
        %v418 = vld [vmem:[#allocation2 + $0x10] sm:$0xff]
        %v419 = vld [vmem:[#allocation2 + $0x18] sm:$0xff]
        %vm420 = vcmask 130048
        %v422 = vsel %vm420, %v414, 0
        %v425 = vsel %vm420, %v415, 0
        %427 = vmatprep.subr.mxu0 %v417
        %428 = vmatpush1.msra.mxu0 %v416
        %429 = vmatprep.subr.mxu0 %v419
        %430 = vmatpush1.msra.mxu0 %v418
        %431 = vmatprep.subr.mxu0 0.0
        %432 = vmatpush1.msra.mxu0 0.0
        %433 = vmatprep.subr.mxu0 0.0
        %434 = vmatpush1.msra.mxu0 0.0
        %435 = vmatprep.subr.mxu0 0.0
        %436 = vmatpush1.msra.mxu0 0.0
        %437 = vmatprep.subr.mxu0 0.0
        %438 = vmatpush1.msra.mxu0 0.0
        %439 = vmatprep.subr.mxu0 0.0
        %440 = vmatpush1.msra.mxu0 0.0
        %441 = vmatprep.subr.mxu0 0.0
        %442 = vmatpush1.msra.mxu0 0.0
        %443 = vmatprep.subr.mxu0 0.0
        %444 = vmatpush1.msra.mxu0 0.0
        %445 = vmatprep.subr.mxu0 0.0
        %446 = vmatpush1.msra.mxu0 0.0
        %447 = vmatprep.subr.mxu0 0.0
        %448 = vmatpush1.msra.mxu0 0.0
        %449 = vmatprep.subr.mxu0 0.0
        %450 = vmatpush1.msra.mxu0 0.0
        %451 = vmatprep.subr.mxu0 0.0
        %452 = vmatpush1.msra.mxu0 0.0
        %453 = vmatprep.subr.mxu0 0.0
        %454 = vmatpush1.msra.mxu0 0.0
        %455 = vmatprep.subr.mxu0 0.0
        %456 = vmatpush1.msra.mxu0 0.0
        %457 = vmatprep.subr.mxu0 0.0
        %458 = vmatpush1.msra.mxu0 0.0
        %459 = vmatprep.subr.mxu0 0.0
        %460 = vmatpush1.msra.mxu0 0.0
        %461 = vmatprep.subr.mxu0 0.0
        %462 = vmatpush1.msra.mxu0 0.0
        %463 = vmatprep.subr.mxu0 0.0
        %464 = vmatpush1.msra.mxu0 0.0
        %465 = vmatprep.subr.mxu0 0.0
        %466 = vmatpush1.msra.mxu0 0.0
        %467 = vmatprep.subr.mxu0 0.0
        %468 = vmatpush1.msra.mxu0 0.0
        %469 = vmatprep.subr.mxu0 0.0
        %470 = vmatpush1.msra.mxu0 0.0
        %471 = vmatprep.subr.mxu0 0.0
        %472 = vmatpush1.msra.mxu0 0.0
        %473 = vmatprep.subr.mxu0 0.0
        %474 = vmatpush1.msra.mxu0 0.0
        %475 = vmatprep.subr.mxu0 0.0
        %476 = vmatpush1.msra.mxu0 0.0
        %477 = vmatprep.subr.mxu0 0.0
        %478 = vmatpush1.msra.mxu0 0.0
        %479 = vmatprep.subr.mxu0 0.0
        %480 = vmatpush1.msra.mxu0 0.0
        %481 = vmatprep.subr.mxu0 0.0
        %482 = vmatpush1.msra.mxu0 0.0
        %483 = vmatprep.subr.mxu0 0.0
        %484 = vmatpush1.msra.mxu0 0.0
        %485 = vmatprep.subr.mxu0 0.0
        %486 = vmatpush1.msra.mxu0 0.0
        %487 = vmatprep.subr.mxu0 0.0
        %488 = vmatpush1.msra.mxu0 0.0
        %489 = vmatprep.subr.mxu0 0.0
        %490 = vmatpush1.msra.mxu0 0.0
        %491 = vmatprep.mubr.f32.mxu0 0.0
        %492 = vmatmul.mubr.f32.gmra.mrb[0].mxu0 %v422
        %v493 = vpop.f32.mrb[0].mxu0
        %v494 = vadd.f32 0.0, %v493
        %v495 = vpop.f32.mrb[0].mxu0
        %v496 = vadd.f32 0.0, %v495
        %497 = vmatprep.mubr.f32.mxu0 0.0
        %498 = vmatmul.mubr.f32.gmra.mrb[0].mxu0 %v425
        %v499 = vpop.f32.mrb[0].mxu0
        %v500 = vadd.f32 0.0, %v499
        %v501 = vpop.f32.mrb[0].mxu0
        %v502 = vadd.f32 0.0, %v501
        %503 = vdwg.mxu0
        %504 = vst [vmem:[#allocation2] sm:$0xff] %v494
        %505 = vst [vmem:[#allocation2 + $0x8] sm:$0xff] %v496
        %506 = vst [vmem:[#allocation2 + $0x10] sm:$0xff] %v500
        %507 = vst [vmem:[#allocation2 + $0x18] sm:$0xff] %v502
        %s508 = scalar_lea.vmem [#allocation9], 128
        %v509 = vld [vmem:[%s508] sm:$0xff]
        %v510 = vld [vmem:[%s508 + $0x8] sm:$0xff]
        %v511 = vld [vmem:[%s508 + $0x10] sm:$0xff]
        %v512 = vld [vmem:[%s508 + $0x18] sm:$0xff]
        %v513 = vld [vmem:[%s508 + $0x20] sm:$0xff]
        %v514 = vld [vmem:[%s508 + $0x28] sm:$0xff]
        %v515 = vld [vmem:[%s508 + $0x30] sm:$0xff]
        %v516 = vld [vmem:[%s508 + $0x38] sm:$0xff]
        %v517 = vld [vmem:[%s508 + $0x40] sm:$0xff]
        %v518 = vld [vmem:[%s508 + $0x48] sm:$0xff]
        %v519 = vld [vmem:[%s508 + $0x50] sm:$0xff]
        %v520 = vld [vmem:[%s508 + $0x58] sm:$0xff]
        %v521 = vld [vmem:[%s508 + $0x60] sm:$0xff]
        %v522 = vld [vmem:[%s508 + $0x68] sm:$0xff]
        %v523 = vld [vmem:[%s508 + $0x70] sm:$0xff]
        %v524 = vld [vmem:[%s508 + $0x78] sm:$0xff]
        %v525 = vld [vmem:[#allocation2] sm:$0xff]
        %v526 = vld [vmem:[#allocation2 + $0x10] sm:$0xff]
        %v527 = vld [vmem:[#allocation3] sm:$0xff]
        %v528 = vld [vmem:[#allocation3 + $0x10] sm:$0xff]
        %529 = vmatprep.subr.mxu0 0.0
        %530 = vmatpush1.msra.mxu0 %v509
        %531 = vmatprep.subr.mxu0 0.0
        %532 = vmatpush1.msra.mxu0 %v510
        %533 = vmatprep.subr.mxu0 0.0
        %534 = vmatpush1.msra.mxu0 %v511
        %535 = vmatprep.subr.mxu0 0.0
        %536 = vmatpush1.msra.mxu0 %v512
        %537 = vmatprep.subr.mxu0 0.0
        %538 = vmatpush1.msra.mxu0 %v513
        %539 = vmatprep.subr.mxu0 0.0
        %540 = vmatpush1.msra.mxu0 %v514
        %541 = vmatprep.subr.mxu0 0.0
        %542 = vmatpush1.msra.mxu0 %v515
        %543 = vmatprep.subr.mxu0 0.0
        %544 = vmatpush1.msra.mxu0 %v516
        %545 = vmatprep.subr.mxu0 0.0
        %546 = vmatpush1.msra.mxu0 %v517
        %547 = vmatprep.subr.mxu0 0.0
        %548 = vmatpush1.msra.mxu0 %v518
        %549 = vmatprep.subr.mxu0 0.0
        %550 = vmatpush1.msra.mxu0 %v519
        %551 = vmatprep.subr.mxu0 0.0
        %552 = vmatpush1.msra.mxu0 %v520
        %553 = vmatprep.subr.mxu0 0.0
        %554 = vmatpush1.msra.mxu0 %v521
        %555 = vmatprep.subr.mxu0 0.0
        %556 = vmatpush1.msra.mxu0 %v522
        %557 = vmatprep.subr.mxu0 0.0
        %558 = vmatpush1.msra.mxu0 %v523
        %559 = vmatprep.subr.mxu0 0.0
        %560 = vmatpush1.msra.mxu0 %v524
        %561 = vmatprep.subr.mxu0 0.0
        %562 = vmatpush1.msra.mxu0 0.0
        %563 = vmatprep.subr.mxu0 0.0
        %564 = vmatpush1.msra.mxu0 0.0
        %565 = vmatprep.subr.mxu0 0.0
        %566 = vmatpush1.msra.mxu0 0.0
        %567 = vmatprep.subr.mxu0 0.0
        %568 = vmatpush1.msra.mxu0 0.0
        %569 = vmatprep.subr.mxu0 0.0
        %570 = vmatpush1.msra.mxu0 0.0
        %571 = vmatprep.subr.mxu0 0.0
        %572 = vmatpush1.msra.mxu0 0.0
        %573 = vmatprep.subr.mxu0 0.0
        %574 = vmatpush1.msra.mxu0 0.0
        %575 = vmatprep.subr.mxu0 0.0
        %576 = vmatpush1.msra.mxu0 0.0
        %577 = vmatprep.subr.mxu0 0.0
        %578 = vmatpush1.msra.mxu0 0.0
        %579 = vmatprep.subr.mxu0 0.0
        %580 = vmatpush1.msra.mxu0 0.0
        %581 = vmatprep.subr.mxu0 0.0
        %582 = vmatpush1.msra.mxu0 0.0
        %583 = vmatprep.subr.mxu0 0.0
        %584 = vmatpush1.msra.mxu0 0.0
        %585 = vmatprep.subr.mxu0 0.0
        %586 = vmatpush1.msra.mxu0 0.0
        %587 = vmatprep.subr.mxu0 0.0
        %588 = vmatpush1.msra.mxu0 0.0
        %589 = vmatprep.subr.mxu0 0.0
        %590 = vmatpush1.msra.mxu0 0.0
        %591 = vmatprep.subr.mxu0 0.0
        %592 = vmatpush1.msra.mxu0 0.0
        %593 = vmatprep.mubr.f32.mxu0 0.0
        %594 = vmatmul.mubr.f32.gmra.mrb[0].mxu0 %v525
        %v595 = vpop.f32.mrb[0].mxu0
        %v596 = vadd.f32 0.0, %v595
        %v597 = vpop.f32.mrb[0].mxu0
        %598 = vmatprep.mubr.f32.mxu0 0.0
        %599 = vmatmul.mubr.f32.gmra.mrb[0].mxu0 %v526
        %v600 = vpop.f32.mrb[0].mxu0
        %v601 = vadd.f32 0.0, %v600
        %v602 = vpop.f32.mrb[0].mxu0
        %603 = vdwg.mxu0
        %v604 = vadd.f32 %v527, %v596
        %v605 = vadd.f32 %v528, %v601
        %606 = vst [vmem:[#allocation3] sm:$0xff] %v604
        %607 = vst [vmem:[#allocation3 + $0x10] sm:$0xff] %v605
        %v608 = vld [vmem:[#allocation2 + $0x8] sm:$0xff]
        %v609 = vld [vmem:[#allocation2 + $0x18] sm:$0xff]
        %v610 = vld [vmem:[#allocation3 + $0x8] sm:$0xff]
        %v611 = vld [vmem:[#allocation3 + $0x18] sm:$0xff]
        %612 = vmatprep.subr.mxu0 0.0
        %613 = vmatpush1.msra.mxu0 %v509
        %614 = vmatprep.subr.mxu0 0.0
        %615 = vmatpush1.msra.mxu0 %v510
        %616 = vmatprep.subr.mxu0 0.0
        %617 = vmatpush1.msra.mxu0 %v511
        %618 = vmatprep.subr.mxu0 0.0
        %619 = vmatpush1.msra.mxu0 %v512
        %620 = vmatprep.subr.mxu0 0.0
        %621 = vmatpush1.msra.mxu0 %v513
        %622 = vmatprep.subr.mxu0 0.0
        %623 = vmatpush1.msra.mxu0 %v514
        %624 = vmatprep.subr.mxu0 0.0
        %625 = vmatpush1.msra.mxu0 %v515
        %626 = vmatprep.subr.mxu0 0.0
        %627 = vmatpush1.msra.mxu0 %v516
        %628 = vmatprep.subr.mxu0 0.0
        %629 = vmatpush1.msra.mxu0 %v517
        %630 = vmatprep.subr.mxu0 0.0
        %631 = vmatpush1.msra.mxu0 %v518
        %632 = vmatprep.subr.mxu0 0.0
        %633 = vmatpush1.msra.mxu0 %v519
        %634 = vmatprep.subr.mxu0 0.0
        %635 = vmatpush1.msra.mxu0 %v520
        %636 = vmatprep.subr.mxu0 0.0
        %637 = vmatpush1.msra.mxu0 %v521
        %638 = vmatprep.subr.mxu0 0.0
        %639 = vmatpush1.msra.mxu0 %v522
        %640 = vmatprep.subr.mxu0 0.0
        %641 = vmatpush1.msra.mxu0 %v523
        %642 = vmatprep.subr.mxu0 0.0
        %643 = vmatpush1.msra.mxu0 %v524
        %644 = vmatprep.subr.mxu0 0.0
        %645 = vmatpush1.msra.mxu0 0.0
        %646 = vmatprep.subr.mxu0 0.0
        %647 = vmatpush1.msra.mxu0 0.0
        %648 = vmatprep.subr.mxu0 0.0
        %649 = vmatpush1.msra.mxu0 0.0
        %650 = vmatprep.subr.mxu0 0.0
        %651 = vmatpush1.msra.mxu0 0.0
        %652 = vmatprep.subr.mxu0 0.0
        %653 = vmatpush1.msra.mxu0 0.0
        %654 = vmatprep.subr.mxu0 0.0
        %655 = vmatpush1.msra.mxu0 0.0
        %656 = vmatprep.subr.mxu0 0.0
        %657 = vmatpush1.msra.mxu0 0.0
        %658 = vmatprep.subr.mxu0 0.0
        %659 = vmatpush1.msra.mxu0 0.0
        %660 = vmatprep.subr.mxu0 0.0
        %661 = vmatpush1.msra.mxu0 0.0
        %662 = vmatprep.subr.mxu0 0.0
        %663 = vmatpush1.msra.mxu0 0.0
        %664 = vmatprep.subr.mxu0 0.0
        %665 = vmatpush1.msra.mxu0 0.0
        %666 = vmatprep.subr.mxu0 0.0
        %667 = vmatpush1.msra.mxu0 0.0
        %668 = vmatprep.subr.mxu0 0.0
        %669 = vmatpush1.msra.mxu0 0.0
        %670 = vmatprep.subr.mxu0 0.0
        %671 = vmatpush1.msra.mxu0 0.0
        %672 = vmatprep.subr.mxu0 0.0
        %673 = vmatpush1.msra.mxu0 0.0
        %674 = vmatprep.subr.mxu0 0.0
        %675 = vmatpush1.msra.mxu0 0.0
        %676 = vmatprep.mubr.f32.mxu0 0.0
        %677 = vmatmul.mubr.f32.gmra.mrb[0].mxu0 %v608
        %v678 = vpop.f32.mrb[0].mxu0
        %v679 = vadd.f32 0.0, %v678
        %v680 = vpop.f32.mrb[0].mxu0
        %681 = vmatprep.mubr.f32.mxu0 0.0
        %682 = vmatmul.mubr.f32.gmra.mrb[0].mxu0 %v609
        %v683 = vpop.f32.mrb[0].mxu0
        %v684 = vadd.f32 0.0, %v683
        %v685 = vpop.f32.mrb[0].mxu0
        %686 = vdwg.mxu0
        %v687 = vadd.f32 %v610, %v679
        %v688 = vadd.f32 %v611, %v684
        %689 = vst [vmem:[#allocation3 + $0x8] sm:$0xff] %v687
        %690 = vst [vmem:[#allocation3 + $0x18] sm:$0xff] %v688
        %v691 = vld [vmem:[#allocation4] sm:$0xff]
        %v692 = vld [vmem:[#allocation4 + $0x8] sm:$0xff]
        %v693 = vld [vmem:[#allocation2] sm:$0xff]
        %v694 = vld [vmem:[#allocation2 + $0x8] sm:$0xff]
        %v695 = vld [vmem:[#allocation2 + $0x10] sm:$0xff]
        %v696 = vld [vmem:[#allocation2 + $0x18] sm:$0xff]
        %v698 = vsel %vm420, %v691, 0
        %v701 = vsel %vm420, %v692, 0
        %703 = vmatprep.subr.mxu0 %v694
        %704 = vmatpush1.msra.mxu0 %v693
        %705 = vmatprep.subr.mxu0 %v696
        %706 = vmatpush1.msra.mxu0 %v695
        %707 = vmatprep.subr.mxu0 0.0
        %708 = vmatpush1.msra.mxu0 0.0
        %709 = vmatprep.subr.mxu0 0.0
        %710 = vmatpush1.msra.mxu0 0.0
        %711 = vmatprep.subr.mxu0 0.0
        %712 = vmatpush1.msra.mxu0 0.0
        %713 = vmatprep.subr.mxu0 0.0
        %714 = vmatpush1.msra.mxu0 0.0
        %715 = vmatprep.subr.mxu0 0.0
        %716 = vmatpush1.msra.mxu0 0.0
        %717 = vmatprep.subr.mxu0 0.0
        %718 = vmatpush1.msra.mxu0 0.0
        %719 = vmatprep.subr.mxu0 0.0
        %720 = vmatpush1.msra.mxu0 0.0
        %721 = vmatprep.subr.mxu0 0.0
        %722 = vmatpush1.msra.mxu0 0.0
        %723 = vmatprep.subr.mxu0 0.0
        %724 = vmatpush1.msra.mxu0 0.0
        %725 = vmatprep.subr.mxu0 0.0
        %726 = vmatpush1.msra.mxu0 0.0
        %727 = vmatprep.subr.mxu0 0.0
        %728 = vmatpush1.msra.mxu0 0.0
        %729 = vmatprep.subr.mxu0 0.0
        %730 = vmatpush1.msra.mxu0 0.0
        %731 = vmatprep.subr.mxu0 0.0
        %732 = vmatpush1.msra.mxu0 0.0
        %733 = vmatprep.subr.mxu0 0.0
        %734 = vmatpush1.msra.mxu0 0.0
        %735 = vmatprep.subr.mxu0 0.0
        %736 = vmatpush1.msra.mxu0 0.0
        %737 = vmatprep.subr.mxu0 0.0
        %738 = vmatpush1.msra.mxu0 0.0
        %739 = vmatprep.subr.mxu0 0.0
        %740 = vmatpush1.msra.mxu0 0.0
        %741 = vmatprep.subr.mxu0 0.0
        %742 = vmatpush1.msra.mxu0 0.0
        %743 = vmatprep.subr.mxu0 0.0
        %744 = vmatpush1.msra.mxu0 0.0
        %745 = vmatprep.subr.mxu0 0.0
        %746 = vmatpush1.msra.mxu0 0.0
        %747 = vmatprep.subr.mxu0 0.0
        %748 = vmatpush1.msra.mxu0 0.0
        %749 = vmatprep.subr.mxu0 0.0
        %750 = vmatpush1.msra.mxu0 0.0
        %751 = vmatprep.subr.mxu0 0.0
        %752 = vmatpush1.msra.mxu0 0.0
        %753 = vmatprep.subr.mxu0 0.0
        %754 = vmatpush1.msra.mxu0 0.0
        %755 = vmatprep.subr.mxu0 0.0
        %756 = vmatpush1.msra.mxu0 0.0
        %757 = vmatprep.subr.mxu0 0.0
        %758 = vmatpush1.msra.mxu0 0.0
        %759 = vmatprep.subr.mxu0 0.0
        %760 = vmatpush1.msra.mxu0 0.0
        %761 = vmatprep.subr.mxu0 0.0
        %762 = vmatpush1.msra.mxu0 0.0
        %763 = vmatprep.subr.mxu0 0.0
        %764 = vmatpush1.msra.mxu0 0.0
        %765 = vmatprep.subr.mxu0 0.0
        %766 = vmatpush1.msra.mxu0 0.0
        %767 = vmatprep.mubr.f32.mxu0 0.0
        %768 = vmatmul.mubr.f32.gmra.mrb[0].mxu0 %v698
        %v769 = vpop.f32.mrb[0].mxu0
        %v770 = vadd.f32 0.0, %v769
        %v771 = vpop.f32.mrb[0].mxu0
        %v772 = vadd.f32 0.0, %v771
        %773 = vmatprep.mubr.f32.mxu0 0.0
        %774 = vmatmul.mubr.f32.gmra.mrb[0].mxu0 %v701
        %v775 = vpop.f32.mrb[0].mxu0
        %v776 = vadd.f32 0.0, %v775
        %v777 = vpop.f32.mrb[0].mxu0
        %v778 = vadd.f32 0.0, %v777
        %779 = vdwg.mxu0
        %780 = vst [vmem:[#allocation2] sm:$0xff] %v770
        %781 = vst [vmem:[#allocation2 + $0x8] sm:$0xff] %v772
        %782 = vst [vmem:[#allocation2 + $0x10] sm:$0xff] %v776
        %783 = vst [vmem:[#allocation2 + $0x18] sm:$0xff] %v778
        %s784 = scalar_lea.vmem [#allocation9], 256
        %v785 = vld [vmem:[%s784] sm:$0xff]
        %v786 = vld [vmem:[%s784 + $0x8] sm:$0xff]
        %v787 = vld [vmem:[%s784 + $0x10] sm:$0xff]
        %v788 = vld [vmem:[%s784 + $0x18] sm:$0xff]
        %v789 = vld [vmem:[%s784 + $0x20] sm:$0xff]
        %v790 = vld [vmem:[%s784 + $0x28] sm:$0xff]
        %v791 = vld [vmem:[%s784 + $0x30] sm:$0xff]
        %v792 = vld [vmem:[%s784 + $0x38] sm:$0xff]
        %v793 = vld [vmem:[%s784 + $0x40] sm:$0xff]
        %v794 = vld [vmem:[%s784 + $0x48] sm:$0xff]
        %v795 = vld [vmem:[%s784 + $0x50] sm:$0xff]
        %v796 = vld [vmem:[%s784 + $0x58] sm:$0xff]
        %v797 = vld [vmem:[%s784 + $0x60] sm:$0xff]
        %v798 = vld [vmem:[%s784 + $0x68] sm:$0xff]
        %v799 = vld [vmem:[%s784 + $0x70] sm:$0xff]
        %v800 = vld [vmem:[%s784 + $0x78] sm:$0xff]
        %v801 = vld [vmem:[#allocation2] sm:$0xff]
        %v802 = vld [vmem:[#allocation2 + $0x10] sm:$0xff]
        %v803 = vld [vmem:[#allocation3] sm:$0xff]
        %v804 = vld [vmem:[#allocation3 + $0x10] sm:$0xff]
        %805 = vmatprep.subr.mxu0 0.0
        %806 = vmatpush1.msra.mxu0 %v785
        %807 = vmatprep.subr.mxu0 0.0
        %808 = vmatpush1.msra.mxu0 %v786
        %809 = vmatprep.subr.mxu0 0.0
        %810 = vmatpush1.msra.mxu0 %v787
        %811 = vmatprep.subr.mxu0 0.0
        %812 = vmatpush1.msra.mxu0 %v788
        %813 = vmatprep.subr.mxu0 0.0
        %814 = vmatpush1.msra.mxu0 %v789
        %815 = vmatprep.subr.mxu0 0.0
        %816 = vmatpush1.msra.mxu0 %v790
        %817 = vmatprep.subr.mxu0 0.0
        %818 = vmatpush1.msra.mxu0 %v791
        %819 = vmatprep.subr.mxu0 0.0
        %820 = vmatpush1.msra.mxu0 %v792
        %821 = vmatprep.subr.mxu0 0.0
        %822 = vmatpush1.msra.mxu0 %v793
        %823 = vmatprep.subr.mxu0 0.0
        %824 = vmatpush1.msra.mxu0 %v794
        %825 = vmatprep.subr.mxu0 0.0
        %826 = vmatpush1.msra.mxu0 %v795
        %827 = vmatprep.subr.mxu0 0.0
        %828 = vmatpush1.msra.mxu0 %v796
        %829 = vmatprep.subr.mxu0 0.0
        %830 = vmatpush1.msra.mxu0 %v797
        %831 = vmatprep.subr.mxu0 0.0
        %832 = vmatpush1.msra.mxu0 %v798
        %833 = vmatprep.subr.mxu0 0.0
        %834 = vmatpush1.msra.mxu0 %v799
        %835 = vmatprep.subr.mxu0 0.0
        %836 = vmatpush1.msra.mxu0 %v800
        %837 = vmatprep.subr.mxu0 0.0
        %838 = vmatpush1.msra.mxu0 0.0
        %839 = vmatprep.subr.mxu0 0.0
        %840 = vmatpush1.msra.mxu0 0.0
        %841 = vmatprep.subr.mxu0 0.0
        %842 = vmatpush1.msra.mxu0 0.0
        %843 = vmatprep.subr.mxu0 0.0
        %844 = vmatpush1.msra.mxu0 0.0
        %845 = vmatprep.subr.mxu0 0.0
        %846 = vmatpush1.msra.mxu0 0.0
        %847 = vmatprep.subr.mxu0 0.0
        %848 = vmatpush1.msra.mxu0 0.0
        %849 = vmatprep.subr.mxu0 0.0
        %850 = vmatpush1.msra.mxu0 0.0
        %851 = vmatprep.subr.mxu0 0.0
        %852 = vmatpush1.msra.mxu0 0.0
        %853 = vmatprep.subr.mxu0 0.0
        %854 = vmatpush1.msra.mxu0 0.0
        %855 = vmatprep.subr.mxu0 0.0
        %856 = vmatpush1.msra.mxu0 0.0
        %857 = vmatprep.subr.mxu0 0.0
        %858 = vmatpush1.msra.mxu0 0.0
        %859 = vmatprep.subr.mxu0 0.0
        %860 = vmatpush1.msra.mxu0 0.0
        %861 = vmatprep.subr.mxu0 0.0
        %862 = vmatpush1.msra.mxu0 0.0
        %863 = vmatprep.subr.mxu0 0.0
        %864 = vmatpush1.msra.mxu0 0.0
        %865 = vmatprep.subr.mxu0 0.0
        %866 = vmatpush1.msra.mxu0 0.0
        %867 = vmatprep.subr.mxu0 0.0
        %868 = vmatpush1.msra.mxu0 0.0
        %869 = vmatprep.mubr.f32.mxu0 0.0
        %870 = vmatmul.mubr.f32.gmra.mrb[0].mxu0 %v801
        %v871 = vpop.f32.mrb[0].mxu0
        %v872 = vadd.f32 0.0, %v871
        %v873 = vpop.f32.mrb[0].mxu0
        %874 = vmatprep.mubr.f32.mxu0 0.0
        %875 = vmatmul.mubr.f32.gmra.mrb[0].mxu0 %v802
        %v876 = vpop.f32.mrb[0].mxu0
        %v877 = vadd.f32 0.0, %v876
        %v878 = vpop.f32.mrb[0].mxu0
        %879 = vdwg.mxu0
        %v880 = vadd.f32 %v803, %v872
        %v881 = vadd.f32 %v804, %v877
        %882 = vst [vmem:[#allocation3] sm:$0xff] %v880
        %883 = vst [vmem:[#allocation3 + $0x10] sm:$0xff] %v881
        %v884 = vld [vmem:[#allocation2 + $0x8] sm:$0xff]
        %v885 = vld [vmem:[#allocation2 + $0x18] sm:$0xff]
        %v886 = vld [vmem:[#allocation3 + $0x8] sm:$0xff]
        %v887 = vld [vmem:[#allocation3 + $0x18] sm:$0xff]
        %888 = vmatprep.subr.mxu0 0.0
        %889 = vmatpush1.msra.mxu0 %v785
        %890 = vmatprep.subr.mxu0 0.0
        %891 = vmatpush1.msra.mxu0 %v786
        %892 = vmatprep.subr.mxu0 0.0
        %893 = vmatpush1.msra.mxu0 %v787
        %894 = vmatprep.subr.mxu0 0.0
        %895 = vmatpush1.msra.mxu0 %v788
        %896 = vmatprep.subr.mxu0 0.0
        %897 = vmatpush1.msra.mxu0 %v789
        %898 = vmatprep.subr.mxu0 0.0
        %899 = vmatpush1.msra.mxu0 %v790
        %900 = vmatprep.subr.mxu0 0.0
        %901 = vmatpush1.msra.mxu0 %v791
        %902 = vmatprep.subr.mxu0 0.0
        %903 = vmatpush1.msra.mxu0 %v792
        %904 = vmatprep.subr.mxu0 0.0
        %905 = vmatpush1.msra.mxu0 %v793
        %906 = vmatprep.subr.mxu0 0.0
        %907 = vmatpush1.msra.mxu0 %v794
        %908 = vmatprep.subr.mxu0 0.0
        %909 = vmatpush1.msra.mxu0 %v795
        %910 = vmatprep.subr.mxu0 0.0
        %911 = vmatpush1.msra.mxu0 %v796
        %912 = vmatprep.subr.mxu0 0.0
        %913 = vmatpush1.msra.mxu0 %v797
        %914 = vmatprep.subr.mxu0 0.0
        %915 = vmatpush1.msra.mxu0 %v798
        %916 = vmatprep.subr.mxu0 0.0
        %917 = vmatpush1.msra.mxu0 %v799
        %918 = vmatprep.subr.mxu0 0.0
        %919 = vmatpush1.msra.mxu0 %v800
        %920 = vmatprep.subr.mxu0 0.0
        %921 = vmatpush1.msra.mxu0 0.0
        %922 = vmatprep.subr.mxu0 0.0
        %923 = vmatpush1.msra.mxu0 0.0
        %924 = vmatprep.subr.mxu0 0.0
        %925 = vmatpush1.msra.mxu0 0.0
        %926 = vmatprep.subr.mxu0 0.0
        %927 = vmatpush1.msra.mxu0 0.0
        %928 = vmatprep.subr.mxu0 0.0
        %929 = vmatpush1.msra.mxu0 0.0
        %930 = vmatprep.subr.mxu0 0.0
        %931 = vmatpush1.msra.mxu0 0.0
        %932 = vmatprep.subr.mxu0 0.0
        %933 = vmatpush1.msra.mxu0 0.0
        %934 = vmatprep.subr.mxu0 0.0
        %935 = vmatpush1.msra.mxu0 0.0
        %936 = vmatprep.subr.mxu0 0.0
        %937 = vmatpush1.msra.mxu0 0.0
        %938 = vmatprep.subr.mxu0 0.0
        %939 = vmatpush1.msra.mxu0 0.0
        %940 = vmatprep.subr.mxu0 0.0
        %941 = vmatpush1.msra.mxu0 0.0
        %942 = vmatprep.subr.mxu0 0.0
        %943 = vmatpush1.msra.mxu0 0.0
        %944 = vmatprep.subr.mxu0 0.0
        %945 = vmatpush1.msra.mxu0 0.0
        %946 = vmatprep.subr.mxu0 0.0
        %947 = vmatpush1.msra.mxu0 0.0
        %948 = vmatprep.subr.mxu0 0.0
        %949 = vmatpush1.msra.mxu0 0.0
        %950 = vmatprep.subr.mxu0 0.0
        %951 = vmatpush1.msra.mxu0 0.0
        %952 = vmatprep.mubr.f32.mxu0 0.0
        %953 = vmatmul.mubr.f32.gmra.mrb[0].mxu0 %v884
        %v954 = vpop.f32.mrb[0].mxu0
        %v955 = vadd.f32 0.0, %v954
        %v956 = vpop.f32.mrb[0].mxu0
        %957 = vmatprep.mubr.f32.mxu0 0.0
        %958 = vmatmul.mubr.f32.gmra.mrb[0].mxu0 %v885
        %v959 = vpop.f32.mrb[0].mxu0
        %v960 = vadd.f32 0.0, %v959
        %v961 = vpop.f32.mrb[0].mxu0
        %962 = vdwg.mxu0
        %v963 = vadd.f32 %v886, %v955
        %v964 = vadd.f32 %v887, %v960
        %965 = vst [vmem:[#allocation3 + $0x8] sm:$0xff] %v963
        %966 = vst [vmem:[#allocation3 + $0x18] sm:$0xff] %v964
        %v967 = vld [vmem:[#allocation3] sm:$0xff]
        %v968 = vld [vmem:[#allocation3 + $0x8] sm:$0xff]
        %v969 = vld [vmem:[#allocation3 + $0x10] sm:$0xff]
        %v970 = vld [vmem:[#allocation3 + $0x18] sm:$0xff]
        %v971 = vmax.f32 %v967, 0.0
        %v972 = vmax.f32 %v968, 0.0
        %v973 = vmax.f32 %v969, 0.0
        %v974 = vmax.f32 %v970, 0.0
        %975 = vst [vmem:[%s217] sm:$0xff] %v971
        %976 = vst [vmem:[%s217 + $0x8] sm:$0xff] %v972
        %977 = vst [vmem:[%s217 + $0x10] sm:$0xff] %v973
        %978 = vst [vmem:[%s217 + $0x18] sm:$0xff] %v974
        %s979 = sand.u32 %s97, 1
        %s980 = scalar_lea.sflag [#allocation6], %s979
        %s981 = sand.u32 %s97, 1
        %s982 = smul.addr %s981, 32
        %s983 = scalar_lea.vmem [#allocation10], %s982
        // Predicated region
        $region45: #{tpu_custom_call.1} parent=31 // pred_check
          %p984 = pneg %p107
        $region46: #{tpu_custom_call.1} parent=31 // pred_check_branch
          %986 = sbr.rel (%p984) target = $region48
        $region47: #{tpu_custom_call.1} parent=31 // pred_region
          %s987 = smul.u32 2, %s21
          %s989 = ssub.s32 512, 512
          %990 = vsyncadd %s980, %s989
          %s991 = smul.addr %s987, 128
          %s992 = scalar_lea.hbm %s3, %s991
          %s993 = sshll.u32 %s983, 4
          %s994 = int_to_ptr.vmem [resolvable:$true] %s993
          %999 = dma.vmem_to_hbm [thread:$0]  %s994, 512, %s992, %s980, 256, 1024, 16
        $region48: #{tpu_custom_call.1} parent=31 // pred_fallthru
          _
      $region32: #{tpu_custom_call.1} parent=5 // pred_fallthru
        _
      %p1000 = scmp.le.s32.totalorder 2, %s16
      // Predicated region
      $region49: #{tpu_custom_call.1} parent=5 // pred_check
        %p1001 = pneg %p1000
      $region50: #{tpu_custom_call.1} parent=5 // pred_check_branch
        %1003 = sbr.rel (%p1001) target = $region52
      $region51: #{tpu_custom_call.1} parent=5 // pred_region
        %s1004 = ssub.s32 %s16, 2
        // Predicated region
        $region53: #{tpu_custom_call.1} parent=51 // pred_check
          %p1005 = pneg %p113
        $region54: #{tpu_custom_call.1} parent=51 // pred_check_branch
          %1007 = sbr.rel (%p1005) target = $region56
        $region55: #{tpu_custom_call.1} parent=51 // pred_region
          %s1008 = sand.u32 %s98, 1
          %s1009 = scalar_lea.sflag [#allocation6], %s1008
          %s1010 = sand.u32 %s98, 1
          %s1011 = smul.addr %s1010, 32
          %s1012 = scalar_lea.vmem [#allocation10], %s1011
          %1013 = dma.done %s1009, 512
        $region56: #{tpu_custom_call.1} parent=51 // pred_fallthru
          _
      $region52: #{tpu_custom_call.1} parent=5 // pred_fallthru
        _
    $region6: #{tpu_custom_call.1} parent=1 // loop_footer
      %s20 = sadd.s32 1, %s16
    $region7: #{tpu_custom_call.1} parent=1 // loop_footer_branch
      %15 = sbr.rel target = $region3
    $region8: #{tpu_custom_call.1} parent=1 // loop_exit
      _
    %1014 = vsyncpa [#allocation5], 1
    %s1015 = scalar_lea.sflag [#allocation5], 1
    %1016 = vsyncpa %s1015, 1
    %1017 = vsyncpa [#allocation8], 1
    %s1018 = scalar_lea.sflag [#allocation8], 1
    %1019 = vsyncpa %s1018, 1
    %1020 = vsyncpa [#allocation6], 1
    %s1021 = scalar_lea.sflag [#allocation6], 1
    %1022 = vsyncpa %s1021, 1

// kernel: tpu_custom_call.1
$region0: #{tpu_custom_call.1}
  #allocation0 [shape = 'u32[]', space=smem, size = 0x4, offset = 0x4, fixed_abs, tag = 'smem constant byte address 0x4 - core index']
  #allocation1 [shape = 'u32[144,128]{1,0:T(1,128)}', space=vmem, size = 0x12000, scoped, tag = 'internal scratch']
  #allocation2 [shape = 'f32[16,256]{1,0:T(8,128)}', space=vmem, size = 0x4000, scoped, tag = 'scratch operand']
  #allocation3 [shape = 'f32[16,256]{1,0:T(8,128)}', space=vmem, size = 0x4000, scoped, tag = 'scratch operand']
  %s0 = inlined_call_operand.hbm [shape: f32[16,16], index: 0, kind: input, shape index: {}]
  %s1 = inlined_call_operand.hbm [shape: f32[16,1024], index: 1, kind: input, shape index: {}]
  %s2 = inlined_call_operand.hbm [shape: f32[3,128,128], index: 2, kind: input, shape index: {}]
  %s3 = inlined_call_operand.hbm [shape: f32[16,1024], index: 3, kind: output, shape index: {}]
  %s4 = sld [smem:[#allocation0]]
  $region57: #{tpu_custom_call.1} parent=0
    _
  %s6 = ssub.s32 1, %s4
  %s7 = scalar_select 0, %s6, %s4
  $region1: #{tpu_custom_call.1} parent=0
    #allocation4 [shape = 'u8[8192]{0}', space=vmem, size = 0x2000, scoped, tag = 'input window, operand 0, single buffered']
    #allocation5 [shape = 's32[2]{0}', space=sflag, size = 0x8, scoped, tag = 'scoped memory for tpu_custom_call.1']
    #allocation6 [shape = 's32[2]{0}', space=sflag, size = 0x8, scoped, tag = 'scoped memory for tpu_custom_call.1']
    #allocation7 [shape = 'u8[32768]{0}', space=vmem, size = 0x8000, scoped, tag = 'input window, operand 1']
    #allocation8 [shape = 's32[2]{0}', space=sflag, size = 0x8, scoped, tag = 'scoped memory for tpu_custom_call.1']
    #allocation9 [shape = 'u8[196608]{0}', space=vmem, size = 0x30000, scoped, tag = 'input window, operand 2, single buffered']
    #allocation10 [shape = 'u8[32768]{0}', space=vmem, size = 0x8000, scoped, tag = 'output window, operand 0']
    %8 = vsyncpa [#allocation5], 0
    %9 = vsyncpa [#allocation8], 0
    %s10 = scalar_lea.sflag [#allocation8], 1
    %11 = vsyncpa %s10, 0
    %12 = vsyncpa [#allocation6], 0
    %s13 = scalar_lea.sflag [#allocation6], 1
    %14 = vsyncpa %s13, 0
    loop: start=0, step=1, limit=6
    $region2: #{tpu_custom_call.1} parent=1 // loop_pre_header
      _
    $region3: #{tpu_custom_call.1} parent=1 // loop_header
      %s16 = sphi 0, %s20
      %p17 = scmp.ge.s32.totalorder %s16, 6
      %s24 = sphi 0, %s24
      %s26 = sphi 0, %s24
      %s27 = sphi 0, %s26
      %s41 = sphi 0, %s27
      %s47 = sphi 0, %s49
      %s50 = sphi 0, %s47
      %s51 = sphi 0, %s50
      %s67 = sphi 0, %s51
      %s71 = sphi 0, %s71
      %s73 = sphi 0, %s71
      %s74 = sphi 0, %s73
      %s88 = sphi 0, %s74
      %s94 = sphi 0, %s96
      %s97 = sphi 0, %s94
      %s98 = sphi 0, %s97
      %s114 = sphi 0, %s98
    $region4: #{tpu_custom_call.1} parent=1 // loop_header_branch
      %19 = sbr.rel (%p17) target = $region8
    $region5: #{tpu_custom_call.1} parent=1 // loop_body
      %s21 = ssub.s32 %s16, 1
      %s22 = ssub.s32 %s16, 2
      %s23 = sadd.s32 %s16, 1
      %s25 = sadd.s32 %s24, 1
      %p28 = scmp.eq.s32.totalorder %s16, 3
      %p29 = scmp.ne.s32.totalorder %s24, %s26
      %p30 = scmp.eq.s32.totalorder %s16, 0
      %p31 = por %p29, %p30
      %p32 = scmp.ne.s32.totalorder %s24, %s26
      %p33 = scmp.eq.s32.totalorder %s21, 3
      %p34 = por %p32, %p33
      %p35 = scmp.ne.s32.totalorder %s26, %s27
      %p36 = scmp.eq.s32.totalorder %s21, 0
      %p37 = por %p35, %p36
      %p38 = scmp.ne.s32.totalorder %s26, %s27
      %p39 = scmp.eq.s32.totalorder %s22, 3
      %p40 = por %p38, %p39
      %p42 = scmp.ne.s32.totalorder %s27, %s41
      %p43 = scmp.eq.s32.totalorder %s22, 0
      %p44 = por %p42, %p43
      %s45 = ssub.s32 %s16, %s23
      %p46 = scmp.eq.s32.totalorder %s45, 0
      %s48 = sadd.s32 %s47, 1
      %s49 = scalar_select %p46, %s47, %s48
      %p52 = pneg %p46
      %p53 = scmp.eq.s32.totalorder %s16, 3
      %p54 = por %p52, %p53
      %p55 = scmp.ne.s32.totalorder %s47, %s50
      %p56 = scmp.eq.s32.totalorder %s16, 0
      %p57 = por %p55, %p56
      %p58 = scmp.ne.s32.totalorder %s47, %s50
      %p59 = scmp.eq.s32.totalorder %s21, 3
      %p60 = por %p58, %p59
      %p61 = scmp.ne.s32.totalorder %s50, %s51
      %p62 = scmp.eq.s32.totalorder %s21, 0
      %p63 = por %p61, %p62
      %p64 = scmp.ne.s32.totalorder %s50, %s51
      %p65 = scmp.eq.s32.totalorder %s22, 3
      %p66 = por %p64, %p65
      %p68 = scmp.ne.s32.totalorder %s51, %s67
      %p69 = scmp.eq.s32.totalorder %s22, 0
      %p70 = por %p68, %p69
      %s72 = sadd.s32 %s71, 1
      %p75 = scmp.eq.s32.totalorder %s16, 3
      %p76 = scmp.ne.s32.totalorder %s71, %s73
      %p77 = scmp.eq.s32.totalorder %s16, 0
      %p78 = por %p76, %p77
      %p79 = scmp.ne.s32.totalorder %s71, %s73
      %p80 = scmp.eq.s32.totalorder %s21, 3
      %p81 = por %p79, %p80
      %p82 = scmp.ne.s32.totalorder %s73, %s74
      %p83 = scmp.eq.s32.totalorder %s21, 0
      %p84 = por %p82, %p83
      %p85 = scmp.ne.s32.totalorder %s73, %s74
      %p86 = scmp.eq.s32.totalorder %s22, 3
      %p87 = por %p85, %p86
      %p89 = scmp.ne.s32.totalorder %s74, %s88
      %p90 = scmp.eq.s32.totalorder %s22, 0
      %p91 = por %p89, %p90
      %s92 = ssub.s32 %s16, %s23
      %p93 = scmp.eq.s32.totalorder %s92, 0
      %s95 = sadd.s32 %s94, 1
      %s96 = scalar_select %p93, %s94, %s95
      %p99 = pneg %p93
      %p100 = scmp.eq.s32.totalorder %s16, 3
      %p101 = por %p99, %p100
      %p102 = scmp.ne.s32.totalorder %s94, %s97
      %p103 = scmp.eq.s32.totalorder %s16, 0
      %p104 = por %p102, %p103
      %p105 = scmp.ne.s32.totalorder %s94, %s97
      %p106 = scmp.eq.s32.totalorder %s21, 3
      %p107 = por %p105, %p106
      %p108 = scmp.ne.s32.totalorder %s97, %s98
      %p109 = scmp.eq.s32.totalorder %s21, 0
      %p110 = por %p108, %p109
      %p111 = scmp.ne.s32.totalorder %s97, %s98
      %p112 = scmp.eq.s32.totalorder %s22, 3
      %p113 = por %p111, %p112
      %p115 = scmp.ne.s32.totalorder %s98, %s114
      %p116 = scmp.eq.s32.totalorder %s22, 0
      %p117 = por %p115, %p116
      %p118 = scmp.le.s32.totalorder 1, %s16
      %p119 = scmp.lt.s32.totalorder %s16, 5
      %p120 = pnand %p118, %p119
      %p121 = pneg %p120
      // Predicated region
      $region9: #{tpu_custom_call.1} parent=5 // pred_check
        _
      $region10: #{tpu_custom_call.1} parent=5 // pred_check_branch
        %123 = sbr.rel (%p120) target = $region12
      $region11: #{tpu_custom_call.1} parent=5 // pred_region
        %s124 = ssub.s32 %s16, 1
        // Predicated region
        $region13: #{tpu_custom_call.1} parent=11 // pred_check
          %p125 = pneg %p37
        $region14: #{tpu_custom_call.1} parent=11 // pred_check_branch
          %127 = sbr.rel (%p125) target = $region16
        $region15: #{tpu_custom_call.1} parent=11 // pred_region
          %s129 = ssub.s32 256, 256
          %130 = vsyncadd [#allocation5], %s129
          %s131 = sshll.u32 [#allocation4], 4
          %s132 = int_to_ptr.vmem [resolvable:$true] %s131
          %137 = dma.hbm_to_vmem [thread:$0]  %s0, 256, %s132, [#allocation5], 128, 128, 8
        $region16: #{tpu_custom_call.1} parent=11 // pred_fallthru
          _
        // Predicated region
        $region17: #{tpu_custom_call.1} parent=11 // pred_check
          %p138 = pneg %p84
        $region18: #{tpu_custom_call.1} parent=11 // pred_check_branch
          %140 = sbr.rel (%p138) target = $region20
        $region19: #{tpu_custom_call.1} parent=11 // pred_region
          %s142 = ssub.s32 6144, 6144
          %143 = vsyncadd [#allocation8], %s142
          %s144 = sshll.u32 [#allocation9], 4
          %s145 = int_to_ptr.vmem [resolvable:$true] %s144
          %150 = dma.hbm_to_vmem [thread:$0]  %s2, 6144, %s145, [#allocation8], 128, 128, 8
        $region20: #{tpu_custom_call.1} parent=11 // pred_fallthru
          _
      $region12: #{tpu_custom_call.1} parent=5 // pred_fallthru
        _
      %p151 = scmp.lt.s32.totalorder %s16, 4
      // Predicated region
      $region21: #{tpu_custom_call.1} parent=5 // pred_check
        %p152 = pneg %p151
      $region22: #{tpu_custom_call.1} parent=5 // pred_check_branch
        %154 = sbr.rel (%p152) target = $region24
      $region23: #{tpu_custom_call.1} parent=5 // pred_region
        // Predicated region
        $region25: #{tpu_custom_call.1} parent=23 // pred_check
          %p155 = pneg %p57
        $region26: #{tpu_custom_call.1} parent=23 // pred_check_branch
          %157 = sbr.rel (%p155) target = $region28
        $region27: #{tpu_custom_call.1} parent=23 // pred_region
          %s158 = sand.u32 %s16, 1
          %s159 = scalar_lea.sflag [#allocation8], %s158
          %s160 = sand.u32 %s47, 1
          %s161 = smul.addr %s160, 32
          %s162 = scalar_lea.vmem [#allocation7], %s161
          %s163 = smul.u32 2, %s16
          %s165 = ssub.s32 512, 512
          %166 = vsyncadd %s159, %s165
          %s167 = smul.addr %s163, 128
          %s168 = scalar_lea.hbm %s1, %s167
          %s169 = sshll.u32 %s162, 4
          %s170 = int_to_ptr.vmem [resolvable:$true] %s169
          %175 = dma.hbm_to_vmem [thread:$0]  %s168, 512, %s170, %s159, 1024, 256, 16
        $region28: #{tpu_custom_call.1} parent=23 // pred_fallthru
          _
      $region24: #{tpu_custom_call.1} parent=5 // pred_fallthru
        _
      %p176 = scmp.le.s32.totalorder 1, %s16
      %p177 = scmp.lt.s32.totalorder %s16, 5
      %p178 = pnand %p176, %p177
      %p179 = pneg %p178
      // Predicated region
      $region29: #{tpu_custom_call.1} parent=5 // pred_check
        _
      $region30: #{tpu_custom_call.1} parent=5 // pred_check_branch
        %181 = sbr.rel (%p178) target = $region32
      $region31: #{tpu_custom_call.1} parent=5 // pred_region
        %s182 = ssub.s32 %s16, 1
        // Predicated region
        $region33: #{tpu_custom_call.1} parent=31 // pred_check
          %p183 = pneg %p37
        $region34: #{tpu_custom_call.1} parent=31 // pred_check_branch
          %185 = sbr.rel (%p183) target = $region36
        $region35: #{tpu_custom_call.1} parent=31 // pred_region
          %186 = dma.done [#allocation5], 256
        $region36: #{tpu_custom_call.1} parent=31 // pred_fallthru
          _
        %s187 = sand.u32 %s21, 1
        %s188 = scalar_lea.sflag [#allocation8], %s187
        %s189 = sand.u32 %s50, 1
        %s190 = smul.addr %s189, 32
        %s191 = scalar_lea.vmem [#allocation7], %s190
        // Predicated region
        $region37: #{tpu_custom_call.1} parent=31 // pred_check
          %p192 = pneg %p63
        $region38: #{tpu_custom_call.1} parent=31 // pred_check_branch
          %194 = sbr.rel (%p192) target = $region40
        $region39: #{tpu_custom_call.1} parent=31 // pred_region
          %195 = dma.done %s188, 512
        $region40: #{tpu_custom_call.1} parent=31 // pred_fallthru
          _
        // Predicated region
        $region41: #{tpu_custom_call.1} parent=31 // pred_check
          %p196 = pneg %p84
        $region42: #{tpu_custom_call.1} parent=31 // pred_check_branch
          %198 = sbr.rel (%p196) target = $region44
        $region43: #{tpu_custom_call.1} parent=31 // pred_region
          %199 = dma.done [#allocation8], 6144
        $region44: #{tpu_custom_call.1} parent=31 // pred_fallthru
          _
        %p200 = pneg %p37
        %p201 = pneg %p34
        %s202 = sand.u32 %s21, 1
        %s203 = scalar_lea.sflag [#allocation8], %s202
        %s204 = sand.u32 %s50, 1
        %s205 = smul.addr %s204, 32
        %s206 = scalar_lea.vmem [#allocation7], %s205
        %p207 = pneg %p63
        %p208 = pneg %p60
        %p209 = pneg %p84
        %p210 = pneg %p81
        %p211 = pneg %p110
        %p212 = pneg %p107
        %s213 = sand.u32 %s97, 1
        %s214 = scalar_lea.sflag [#allocation6], %s213
        %s215 = sand.u32 %s97, 1
        %s216 = smul.addr %s215, 32
        %s217 = scalar_lea.vmem [#allocation10], %s216
        %s218 = smul.u32 2, %s21
        %s219 = smul.u32 2, %s21
        %v220 = vld [vmem:[%s191] sm:$0xff]
        %v221 = vld [vmem:[%s191 + $0x8] sm:$0xff]
        %v222 = vld [vmem:[%s191 + $0x10] sm:$0xff]
        %v223 = vld [vmem:[%s191 + $0x18] sm:$0xff]
        %224 = vst [vmem:[#allocation2] sm:$0xff] %v220
        %225 = vst [vmem:[#allocation2 + $0x8] sm:$0xff] %v221
        %226 = vst [vmem:[#allocation2 + $0x10] sm:$0xff] %v222
        %227 = vst [vmem:[#allocation2 + $0x18] sm:$0xff] %v223
        %228 = vst [vmem:[#allocation3] sm:$0xff] 0.0
        %229 = vst [vmem:[#allocation3 + $0x8] sm:$0xff] 0.0
        %230 = vst [vmem:[#allocation3 + $0x10] sm:$0xff] 0.0
        %231 = vst [vmem:[#allocation3 + $0x18] sm:$0xff] 0.0
        %v232 = vld [vmem:[#allocation9] sm:$0xff]
        %v233 = vld [vmem:[#allocation9 + $0x8] sm:$0xff]
        %v234 = vld [vmem:[#allocation9 + $0x10] sm:$0xff]
        %v235 = vld [vmem:[#allocation9 + $0x18] sm:$0xff]
        %v236 = vld [vmem:[#allocation9 + $0x20] sm:$0xff]
        %v237 = vld [vmem:[#allocation9 + $0x28] sm:$0xff]
        %v238 = vld [vmem:[#allocation9 + $0x30] sm:$0xff]
        %v239 = vld [vmem:[#allocation9 + $0x38] sm:$0xff]
        %v240 = vld [vmem:[#allocation9 + $0x40] sm:$0xff]
        %v241 = vld [vmem:[#allocation9 + $0x48] sm:$0xff]
        %v242 = vld [vmem:[#allocation9 + $0x50] sm:$0xff]
        %v243 = vld [vmem:[#allocation9 + $0x58] sm:$0xff]
        %v244 = vld [vmem:[#allocation9 + $0x60] sm:$0xff]
        %v245 = vld [vmem:[#allocation9 + $0x68] sm:$0xff]
        %v246 = vld [vmem:[#allocation9 + $0x70] sm:$0xff]
        %v247 = vld [vmem:[#allocation9 + $0x78] sm:$0xff]
        %v248 = vld [vmem:[#allocation2] sm:$0xff]
        %v249 = vld [vmem:[#allocation2 + $0x10] sm:$0xff]
        %v250 = vld [vmem:[#allocation3] sm:$0xff]
        %v251 = vld [vmem:[#allocation3 + $0x10] sm:$0xff]
        %252 = vmatprep.subr.mxu0 0.0
        %253 = vmatpush1.msra.mxu0 %v232
        %254 = vmatprep.subr.mxu0 0.0
        %255 = vmatpush1.msra.mxu0 %v233
        %256 = vmatprep.subr.mxu0 0.0
        %257 = vmatpush1.msra.mxu0 %v234
        %258 = vmatprep.subr.mxu0 0.0
        %259 = vmatpush1.msra.mxu0 %v235
        %260 = vmatprep.subr.mxu0 0.0
        %261 = vmatpush1.msra.mxu0 %v236
        %262 = vmatprep.subr.mxu0 0.0
        %263 = vmatpush1.msra.mxu0 %v237
        %264 = vmatprep.subr.mxu0 0.0
        %265 = vmatpush1.msra.mxu0 %v238
        %266 = vmatprep.subr.mxu0 0.0
        %267 = vmatpush1.msra.mxu0 %v239
        %268 = vmatprep.subr.mxu0 0.0
        %269 = vmatpush1.msra.mxu0 %v240
        %270 = vmatprep.subr.mxu0 0.0
        %271 = vmatpush1.msra.mxu0 %v241
        %272 = vmatprep.subr.mxu0 0.0
        %273 = vmatpush1.msra.mxu0 %v242
        %274 = vmatprep.subr.mxu0 0.0
        %275 = vmatpush1.msra.mxu0 %v243
        %276 = vmatprep.subr.mxu0 0.0
        %277 = vmatpush1.msra.mxu0 %v244
        %278 = vmatprep.subr.mxu0 0.0
        %279 = vmatpush1.msra.mxu0 %v245
        %280 = vmatprep.subr.mxu0 0.0
        %281 = vmatpush1.msra.mxu0 %v246
        %282 = vmatprep.subr.mxu0 0.0
        %283 = vmatpush1.msra.mxu0 %v247
        %284 = vmatprep.subr.mxu0 0.0
        %285 = vmatpush1.msra.mxu0 0.0
        %286 = vmatprep.subr.mxu0 0.0
        %287 = vmatpush1.msra.mxu0 0.0
        %288 = vmatprep.subr.mxu0 0.0
        %289 = vmatpush1.msra.mxu0 0.0
        %290 = vmatprep.subr.mxu0 0.0
        %291 = vmatpush1.msra.mxu0 0.0
        %292 = vmatprep.subr.mxu0 0.0
        %293 = vmatpush1.msra.mxu0 0.0
        %294 = vmatprep.subr.mxu0 0.0
        %295 = vmatpush1.msra.mxu0 0.0
        %296 = vmatprep.subr.mxu0 0.0
        %297 = vmatpush1.msra.mxu0 0.0
        %298 = vmatprep.subr.mxu0 0.0
        %299 = vmatpush1.msra.mxu0 0.0
        %300 = vmatprep.subr.mxu0 0.0
        %301 = vmatpush1.msra.mxu0 0.0
        %302 = vmatprep.subr.mxu0 0.0
        %303 = vmatpush1.msra.mxu0 0.0
        %304 = vmatprep.subr.mxu0 0.0
        %305 = vmatpush1.msra.mxu0 0.0
        %306 = vmatprep.subr.mxu0 0.0
        %307 = vmatpush1.msra.mxu0 0.0
        %308 = vmatprep.subr.mxu0 0.0
        %309 = vmatpush1.msra.mxu0 0.0
        %310 = vmatprep.subr.mxu0 0.0
        %311 = vmatpush1.msra.mxu0 0.0
        %312 = vmatprep.subr.mxu0 0.0
        %313 = vmatpush1.msra.mxu0 0.0
        %314 = vmatprep.subr.mxu0 0.0
        %315 = vmatpush1.msra.mxu0 0.0
        %316 = vmatprep.mubr.f32.mxu0 0.0
        %317 = vmatmul.mubr.f32.gmra.mrb[0].mxu0 %v248
        %v318 = vpop.f32.mrb[0].mxu0
        %v319 = vadd.f32 0.0, %v318
        %v320 = vpop.f32.mrb[0].mxu0
        %321 = vmatprep.mubr.f32.mxu0 0.0
        %322 = vmatmul.mubr.f32.gmra.mrb[0].mxu0 %v249
        %v323 = vpop.f32.mrb[0].mxu0
        %v324 = vadd.f32 0.0, %v323
        %v325 = vpop.f32.mrb[0].mxu0
        %326 = vdwg.mxu0
        %v327 = vadd.f32 %v250, %v319
        %v328 = vadd.f32 %v251, %v324
        %329 = vst [vmem:[#allocation3] sm:$0xff] %v327
        %330 = vst [vmem:[#allocation3 + $0x10] sm:$0xff] %v328
        %v331 = vld [vmem:[#allocation2 + $0x8] sm:$0xff]
        %v332 = vld [vmem:[#allocation2 + $0x18] sm:$0xff]
        %v333 = vld [vmem:[#allocation3 + $0x8] sm:$0xff]
        %v334 = vld [vmem:[#allocation3 + $0x18] sm:$0xff]
        %335 = vmatprep.subr.mxu0 0.0
        %336 = vmatpush1.msra.mxu0 %v232
        %337 = vmatprep.subr.mxu0 0.0
        %338 = vmatpush1.msra.mxu0 %v233
        %339 = vmatprep.subr.mxu0 0.0
        %340 = vmatpush1.msra.mxu0 %v234
        %341 = vmatprep.subr.mxu0 0.0
        %342 = vmatpush1.msra.mxu0 %v235
        %343 = vmatprep.subr.mxu0 0.0
        %344 = vmatpush1.msra.mxu0 %v236
        %345 = vmatprep.subr.mxu0 0.0
        %346 = vmatpush1.msra.mxu0 %v237
        %347 = vmatprep.subr.mxu0 0.0
        %348 = vmatpush1.msra.mxu0 %v238
        %349 = vmatprep.subr.mxu0 0.0
        %350 = vmatpush1.msra.mxu0 %v239
        %351 = vmatprep.subr.mxu0 0.0
        %352 = vmatpush1.msra.mxu0 %v240
        %353 = vmatprep.subr.mxu0 0.0
        %354 = vmatpush1.msra.mxu0 %v241
        %355 = vmatprep.subr.mxu0 0.0
        %356 = vmatpush1.msra.mxu0 %v242
        %357 = vmatprep.subr.mxu0 0.0
        %358 = vmatpush1.msra.mxu0 %v243
        %359 = vmatprep.subr.mxu0 0.0
        %360 = vmatpush1.msra.mxu0 %v244
        %361 = vmatprep.subr.mxu0 0.0
        %362 = vmatpush1.msra.mxu0 %v245
        %363 = vmatprep.subr.mxu0 0.0
        %364 = vmatpush1.msra.mxu0 %v246
        %365 = vmatprep.subr.mxu0 0.0
        %366 = vmatpush1.msra.mxu0 %v247
        %367 = vmatprep.subr.mxu0 0.0
        %368 = vmatpush1.msra.mxu0 0.0
        %369 = vmatprep.subr.mxu0 0.0
        %370 = vmatpush1.msra.mxu0 0.0
        %371 = vmatprep.subr.mxu0 0.0
        %372 = vmatpush1.msra.mxu0 0.0
        %373 = vmatprep.subr.mxu0 0.0
        %374 = vmatpush1.msra.mxu0 0.0
        %375 = vmatprep.subr.mxu0 0.0
        %376 = vmatpush1.msra.mxu0 0.0
        %377 = vmatprep.subr.mxu0 0.0
        %378 = vmatpush1.msra.mxu0 0.0
        %379 = vmatprep.subr.mxu0 0.0
        %380 = vmatpush1.msra.mxu0 0.0
        %381 = vmatprep.subr.mxu0 0.0
        %382 = vmatpush1.msra.mxu0 0.0
        %383 = vmatprep.subr.mxu0 0.0
        %384 = vmatpush1.msra.mxu0 0.0
        %385 = vmatprep.subr.mxu0 0.0
        %386 = vmatpush1.msra.mxu0 0.0
        %387 = vmatprep.subr.mxu0 0.0
        %388 = vmatpush1.msra.mxu0 0.0
        %389 = vmatprep.subr.mxu0 0.0
        %390 = vmatpush1.msra.mxu0 0.0
        %391 = vmatprep.subr.mxu0 0.0
        %392 = vmatpush1.msra.mxu0 0.0
        %393 = vmatprep.subr.mxu0 0.0
        %394 = vmatpush1.msra.mxu0 0.0
        %395 = vmatprep.subr.mxu0 0.0
        %396 = vmatpush1.msra.mxu0 0.0
        %397 = vmatprep.subr.mxu0 0.0
        %398 = vmatpush1.msra.mxu0 0.0
        %399 = vmatprep.mubr.f32.mxu0 0.0
        %400 = vmatmul.mubr.f32.gmra.mrb[0].mxu0 %v331
        %v401 = vpop.f32.mrb[0].mxu0
        %v402 = vadd.f32 0.0, %v401
        %v403 = vpop.f32.mrb[0].mxu0
        %404 = vmatprep.mubr.f32.mxu0 0.0
        %405 = vmatmul.mubr.f32.gmra.mrb[0].mxu0 %v332
        %v406 = vpop.f32.mrb[0].mxu0
        %v407 = vadd.f32 0.0, %v406
        %v408 = vpop.f32.mrb[0].mxu0
        %409 = vdwg.mxu0
        %v410 = vadd.f32 %v333, %v402
        %v411 = vadd.f32 %v334, %v407
        %412 = vst [vmem:[#allocation3 + $0x8] sm:$0xff] %v410
        %413 = vst [vmem:[#allocation3 + $0x18] sm:$0xff] %v411
        %v414 = vld [vmem:[#allocation4] sm:$0xff]
        %v415 = vld [vmem:[#allocation4 + $0x8] sm:$0xff]
        %v416 = vld [vmem:[#allocation2] sm:$0xff]
        %v417 = vld [vmem:[#allocation2 + $0x8] sm:$0xff]
        %v418 = vld [vmem:[#allocation2 + $0x10] sm:$0xff]
        %v419 = vld [vmem:[#allocation2 + $0x18] sm:$0xff]
        %vm420 = vcmask 130048
        %v422 = vsel %vm420, %v414, 0
        %v425 = vsel %vm420, %v415, 0
        %427 = vmatprep.subr.mxu0 %v417
        %428 = vmatpush1.msra.mxu0 %v416
        %429 = vmatprep.subr.mxu0 %v419
        %430 = vmatpush1.msra.mxu0 %v418
        %431 = vmatprep.subr.mxu0 0.0
        %432 = vmatpush1.msra.mxu0 0.0
        %433 = vmatprep.subr.mxu0 0.0
        %434 = vmatpush1.msra.mxu0 0.0
        %435 = vmatprep.subr.mxu0 0.0
        %436 = vmatpush1.msra.mxu0 0.0
        %437 = vmatprep.subr.mxu0 0.0
        %438 = vmatpush1.msra.mxu0 0.0
        %439 = vmatprep.subr.mxu0 0.0
        %440 = vmatpush1.msra.mxu0 0.0
        %441 = vmatprep.subr.mxu0 0.0
        %442 = vmatpush1.msra.mxu0 0.0
        %443 = vmatprep.subr.mxu0 0.0
        %444 = vmatpush1.msra.mxu0 0.0
        %445 = vmatprep.subr.mxu0 0.0
        %446 = vmatpush1.msra.mxu0 0.0
        %447 = vmatprep.subr.mxu0 0.0
        %448 = vmatpush1.msra.mxu0 0.0
        %449 = vmatprep.subr.mxu0 0.0
        %450 = vmatpush1.msra.mxu0 0.0
        %451 = vmatprep.subr.mxu0 0.0
        %452 = vmatpush1.msra.mxu0 0.0
        %453 = vmatprep.subr.mxu0 0.0
        %454 = vmatpush1.msra.mxu0 0.0
        %455 = vmatprep.subr.mxu0 0.0
        %456 = vmatpush1.msra.mxu0 0.0
        %457 = vmatprep.subr.mxu0 0.0
        %458 = vmatpush1.msra.mxu0 0.0
        %459 = vmatprep.subr.mxu0 0.0
        %460 = vmatpush1.msra.mxu0 0.0
        %461 = vmatprep.subr.mxu0 0.0
        %462 = vmatpush1.msra.mxu0 0.0
        %463 = vmatprep.subr.mxu0 0.0
        %464 = vmatpush1.msra.mxu0 0.0
        %465 = vmatprep.subr.mxu0 0.0
        %466 = vmatpush1.msra.mxu0 0.0
        %467 = vmatprep.subr.mxu0 0.0
        %468 = vmatpush1.msra.mxu0 0.0
        %469 = vmatprep.subr.mxu0 0.0
        %470 = vmatpush1.msra.mxu0 0.0
        %471 = vmatprep.subr.mxu0 0.0
        %472 = vmatpush1.msra.mxu0 0.0
        %473 = vmatprep.subr.mxu0 0.0
        %474 = vmatpush1.msra.mxu0 0.0
        %475 = vmatprep.subr.mxu0 0.0
        %476 = vmatpush1.msra.mxu0 0.0
        %477 = vmatprep.subr.mxu0 0.0
        %478 = vmatpush1.msra.mxu0 0.0
        %479 = vmatprep.subr.mxu0 0.0
        %480 = vmatpush1.msra.mxu0 0.0
        %481 = vmatprep.subr.mxu0 0.0
        %482 = vmatpush1.msra.mxu0 0.0
        %483 = vmatprep.subr.mxu0 0.0
        %484 = vmatpush1.msra.mxu0 0.0
        %485 = vmatprep.subr.mxu0 0.0
        %486 = vmatpush1.msra.mxu0 0.0
        %487 = vmatprep.subr.mxu0 0.0
        %488 = vmatpush1.msra.mxu0 0.0
        %489 = vmatprep.subr.mxu0 0.0
        %490 = vmatpush1.msra.mxu0 0.0
        %491 = vmatprep.mubr.f32.mxu0 0.0
        %492 = vmatmul.mubr.f32.gmra.mrb[0].mxu0 %v422
        %v493 = vpop.f32.mrb[0].mxu0
        %v494 = vadd.f32 0.0, %v493
        %v495 = vpop.f32.mrb[0].mxu0
        %v496 = vadd.f32 0.0, %v495
        %497 = vmatprep.mubr.f32.mxu0 0.0
        %498 = vmatmul.mubr.f32.gmra.mrb[0].mxu0 %v425
        %v499 = vpop.f32.mrb[0].mxu0
        %v500 = vadd.f32 0.0, %v499
        %v501 = vpop.f32.mrb[0].mxu0
        %v502 = vadd.f32 0.0, %v501
        %503 = vdwg.mxu0
        %504 = vst [vmem:[#allocation2] sm:$0xff] %v494
        %505 = vst [vmem:[#allocation2 + $0x8] sm:$0xff] %v496
        %506 = vst [vmem:[#allocation2 + $0x10] sm:$0xff] %v500
        %507 = vst [vmem:[#allocation2 + $0x18] sm:$0xff] %v502
        %s508 = scalar_lea.vmem [#allocation9], 128
        %v509 = vld [vmem:[%s508] sm:$0xff]
        %v510 = vld [vmem:[%s508 + $0x8] sm:$0xff]
        %v511 = vld [vmem:[%s508 + $0x10] sm:$0xff]
        %v512 = vld [vmem:[%s508 + $0x18] sm:$0xff]
        %v513 = vld [vmem:[%s508 + $0x20] sm:$0xff]
        %v514 = vld [vmem:[%s508 + $0x28] sm:$0xff]
        %v515 = vld [vmem:[%s508 + $0x30] sm:$0xff]
        %v516 = vld [vmem:[%s508 + $0x38] sm:$0xff]
        %v517 = vld [vmem:[%s508 + $0x40] sm:$0xff]
        %v518 = vld [vmem:[%s508 + $0x48] sm:$0xff]
        %v519 = vld [vmem:[%s508 + $0x50] sm:$0xff]
        %v520 = vld [vmem:[%s508 + $0x58] sm:$0xff]
        %v521 = vld [vmem:[%s508 + $0x60] sm:$0xff]
        %v522 = vld [vmem:[%s508 + $0x68] sm:$0xff]
        %v523 = vld [vmem:[%s508 + $0x70] sm:$0xff]
        %v524 = vld [vmem:[%s508 + $0x78] sm:$0xff]
        %v525 = vld [vmem:[#allocation2] sm:$0xff]
        %v526 = vld [vmem:[#allocation2 + $0x10] sm:$0xff]
        %v527 = vld [vmem:[#allocation3] sm:$0xff]
        %v528 = vld [vmem:[#allocation3 + $0x10] sm:$0xff]
        %529 = vmatprep.subr.mxu0 0.0
        %530 = vmatpush1.msra.mxu0 %v509
        %531 = vmatprep.subr.mxu0 0.0
        %532 = vmatpush1.msra.mxu0 %v510
        %533 = vmatprep.subr.mxu0 0.0
        %534 = vmatpush1.msra.mxu0 %v511
        %535 = vmatprep.subr.mxu0 0.0
        %536 = vmatpush1.msra.mxu0 %v512
        %537 = vmatprep.subr.mxu0 0.0
        %538 = vmatpush1.msra.mxu0 %v513
        %539 = vmatprep.subr.mxu0 0.0
        %540 = vmatpush1.msra.mxu0 %v514
        %541 = vmatprep.subr.mxu0 0.0
        %542 = vmatpush1.msra.mxu0 %v515
        %543 = vmatprep.subr.mxu0 0.0
        %544 = vmatpush1.msra.mxu0 %v516
        %545 = vmatprep.subr.mxu0 0.0
        %546 = vmatpush1.msra.mxu0 %v517
        %547 = vmatprep.subr.mxu0 0.0
        %548 = vmatpush1.msra.mxu0 %v518
        %549 = vmatprep.subr.mxu0 0.0
        %550 = vmatpush1.msra.mxu0 %v519
        %551 = vmatprep.subr.mxu0 0.0
        %552 = vmatpush1.msra.mxu0 %v520
        %553 = vmatprep.subr.mxu0 0.0
        %554 = vmatpush1.msra.mxu0 %v521
        %555 = vmatprep.subr.mxu0 0.0
        %556 = vmatpush1.msra.mxu0 %v522
        %557 = vmatprep.subr.mxu0 0.0
        %558 = vmatpush1.msra.mxu0 %v523
        %559 = vmatprep.subr.mxu0 0.0
        %560 = vmatpush1.msra.mxu0 %v524
        %561 = vmatprep.subr.mxu0 0.0
        %562 = vmatpush1.msra.mxu0 0.0
        %563 = vmatprep.subr.mxu0 0.0
        %564 = vmatpush1.msra.mxu0 0.0
        %565 = vmatprep.subr.mxu0 0.0
        %566 = vmatpush1.msra.mxu0 0.0
        %567 = vmatprep.subr.mxu0 0.0
        %568 = vmatpush1.msra.mxu0 0.0
        %569 = vmatprep.subr.mxu0 0.0
        %570 = vmatpush1.msra.mxu0 0.0
        %571 = vmatprep.subr.mxu0 0.0
        %572 = vmatpush1.msra.mxu0 0.0
        %573 = vmatprep.subr.mxu0 0.0
        %574 = vmatpush1.msra.mxu0 0.0
        %575 = vmatprep.subr.mxu0 0.0
        %576 = vmatpush1.msra.mxu0 0.0
        %577 = vmatprep.subr.mxu0 0.0
        %578 = vmatpush1.msra.mxu0 0.0
        %579 = vmatprep.subr.mxu0 0.0
        %580 = vmatpush1.msra.mxu0 0.0
        %581 = vmatprep.subr.mxu0 0.0
        %582 = vmatpush1.msra.mxu0 0.0
        %583 = vmatprep.subr.mxu0 0.0
        %584 = vmatpush1.msra.mxu0 0.0
        %585 = vmatprep.subr.mxu0 0.0
        %586 = vmatpush1.msra.mxu0 0.0
        %587 = vmatprep.subr.mxu0 0.0
        %588 = vmatpush1.msra.mxu0 0.0
        %589 = vmatprep.subr.mxu0 0.0
        %590 = vmatpush1.msra.mxu0 0.0
        %591 = vmatprep.subr.mxu0 0.0
        %592 = vmatpush1.msra.mxu0 0.0
        %593 = vmatprep.mubr.f32.mxu0 0.0
        %594 = vmatmul.mubr.f32.gmra.mrb[0].mxu0 %v525
        %v595 = vpop.f32.mrb[0].mxu0
        %v596 = vadd.f32 0.0, %v595
        %v597 = vpop.f32.mrb[0].mxu0
        %598 = vmatprep.mubr.f32.mxu0 0.0
        %599 = vmatmul.mubr.f32.gmra.mrb[0].mxu0 %v526
        %v600 = vpop.f32.mrb[0].mxu0
        %v601 = vadd.f32 0.0, %v600
        %v602 = vpop.f32.mrb[0].mxu0
        %603 = vdwg.mxu0
        %v604 = vadd.f32 %v527, %v596
        %v605 = vadd.f32 %v528, %v601
        %606 = vst [vmem:[#allocation3] sm:$0xff] %v604
        %607 = vst [vmem:[#allocation3 + $0x10] sm:$0xff] %v605
        %v608 = vld [vmem:[#allocation2 + $0x8] sm:$0xff]
        %v609 = vld [vmem:[#allocation2 + $0x18] sm:$0xff]
        %v610 = vld [vmem:[#allocation3 + $0x8] sm:$0xff]
        %v611 = vld [vmem:[#allocation3 + $0x18] sm:$0xff]
        %612 = vmatprep.subr.mxu0 0.0
        %613 = vmatpush1.msra.mxu0 %v509
        %614 = vmatprep.subr.mxu0 0.0
        %615 = vmatpush1.msra.mxu0 %v510
        %616 = vmatprep.subr.mxu0 0.0
        %617 = vmatpush1.msra.mxu0 %v511
        %618 = vmatprep.subr.mxu0 0.0
        %619 = vmatpush1.msra.mxu0 %v512
        %620 = vmatprep.subr.mxu0 0.0
        %621 = vmatpush1.msra.mxu0 %v513
        %622 = vmatprep.subr.mxu0 0.0
        %623 = vmatpush1.msra.mxu0 %v514
        %624 = vmatprep.subr.mxu0 0.0
        %625 = vmatpush1.msra.mxu0 %v515
        %626 = vmatprep.subr.mxu0 0.0
        %627 = vmatpush1.msra.mxu0 %v516
        %628 = vmatprep.subr.mxu0 0.0
        %629 = vmatpush1.msra.mxu0 %v517
        %630 = vmatprep.subr.mxu0 0.0
        %631 = vmatpush1.msra.mxu0 %v518
        %632 = vmatprep.subr.mxu0 0.0
        %633 = vmatpush1.msra.mxu0 %v519
        %634 = vmatprep.subr.mxu0 0.0
        %635 = vmatpush1.msra.mxu0 %v520
        %636 = vmatprep.subr.mxu0 0.0
        %637 = vmatpush1.msra.mxu0 %v521
        %638 = vmatprep.subr.mxu0 0.0
        %639 = vmatpush1.msra.mxu0 %v522
        %640 = vmatprep.subr.mxu0 0.0
        %641 = vmatpush1.msra.mxu0 %v523
        %642 = vmatprep.subr.mxu0 0.0
        %643 = vmatpush1.msra.mxu0 %v524
        %644 = vmatprep.subr.mxu0 0.0
        %645 = vmatpush1.msra.mxu0 0.0
        %646 = vmatprep.subr.mxu0 0.0
        %647 = vmatpush1.msra.mxu0 0.0
        %648 = vmatprep.subr.mxu0 0.0
        %649 = vmatpush1.msra.mxu0 0.0
        %650 = vmatprep.subr.mxu0 0.0
        %651 = vmatpush1.msra.mxu0 0.0
        %652 = vmatprep.subr.mxu0 0.0
        %653 = vmatpush1.msra.mxu0 0.0
        %654 = vmatprep.subr.mxu0 0.0
        %655 = vmatpush1.msra.mxu0 0.0
        %656 = vmatprep.subr.mxu0 0.0
        %657 = vmatpush1.msra.mxu0 0.0
        %658 = vmatprep.subr.mxu0 0.0
        %659 = vmatpush1.msra.mxu0 0.0
        %660 = vmatprep.subr.mxu0 0.0
        %661 = vmatpush1.msra.mxu0 0.0
        %662 = vmatprep.subr.mxu0 0.0
        %663 = vmatpush1.msra.mxu0 0.0
        %664 = vmatprep.subr.mxu0 0.0
        %665 = vmatpush1.msra.mxu0 0.0
        %666 = vmatprep.subr.mxu0 0.0
        %667 = vmatpush1.msra.mxu0 0.0
        %668 = vmatprep.subr.mxu0 0.0
        %669 = vmatpush1.msra.mxu0 0.0
        %670 = vmatprep.subr.mxu0 0.0
        %671 = vmatpush1.msra.mxu0 0.0
        %672 = vmatprep.subr.mxu0 0.0
        %673 = vmatpush1.msra.mxu0 0.0
        %674 = vmatprep.subr.mxu0 0.0
        %675 = vmatpush1.msra.mxu0 0.0
        %676 = vmatprep.mubr.f32.mxu0 0.0
        %677 = vmatmul.mubr.f32.gmra.mrb[0].mxu0 %v608
        %v678 = vpop.f32.mrb[0].mxu0
        %v679 = vadd.f32 0.0, %v678
        %v680 = vpop.f32.mrb[0].mxu0
        %681 = vmatprep.mubr.f32.mxu0 0.0
        %682 = vmatmul.mubr.f32.gmra.mrb[0].mxu0 %v609
        %v683 = vpop.f32.mrb[0].mxu0
        %v684 = vadd.f32 0.0, %v683
        %v685 = vpop.f32.mrb[0].mxu0
        %686 = vdwg.mxu0
        %v687 = vadd.f32 %v610, %v679
        %v688 = vadd.f32 %v611, %v684
        %689 = vst [vmem:[#allocation3 + $0x8] sm:$0xff] %v687
        %690 = vst [vmem:[#allocation3 + $0x18] sm:$0xff] %v688
        %v691 = vld [vmem:[#allocation4] sm:$0xff]
        %v692 = vld [vmem:[#allocation4 + $0x8] sm:$0xff]
        %v693 = vld [vmem:[#allocation2] sm:$0xff]
        %v694 = vld [vmem:[#allocation2 + $0x8] sm:$0xff]
        %v695 = vld [vmem:[#allocation2 + $0x10] sm:$0xff]
        %v696 = vld [vmem:[#allocation2 + $0x18] sm:$0xff]
        %v698 = vsel %vm420, %v691, 0
        %v701 = vsel %vm420, %v692, 0
        %703 = vmatprep.subr.mxu0 %v694
        %704 = vmatpush1.msra.mxu0 %v693
        %705 = vmatprep.subr.mxu0 %v696
        %706 = vmatpush1.msra.mxu0 %v695
        %707 = vmatprep.subr.mxu0 0.0
        %708 = vmatpush1.msra.mxu0 0.0
        %709 = vmatprep.subr.mxu0 0.0
        %710 = vmatpush1.msra.mxu0 0.0
        %711 = vmatprep.subr.mxu0 0.0
        %712 = vmatpush1.msra.mxu0 0.0
        %713 = vmatprep.subr.mxu0 0.0
        %714 = vmatpush1.msra.mxu0 0.0
        %715 = vmatprep.subr.mxu0 0.0
        %716 = vmatpush1.msra.mxu0 0.0
        %717 = vmatprep.subr.mxu0 0.0
        %718 = vmatpush1.msra.mxu0 0.0
        %719 = vmatprep.subr.mxu0 0.0
        %720 = vmatpush1.msra.mxu0 0.0
        %721 = vmatprep.subr.mxu0 0.0
        %722 = vmatpush1.msra.mxu0 0.0
        %723 = vmatprep.subr.mxu0 0.0
        %724 = vmatpush1.msra.mxu0 0.0
        %725 = vmatprep.subr.mxu0 0.0
        %726 = vmatpush1.msra.mxu0 0.0
        %727 = vmatprep.subr.mxu0 0.0
        %728 = vmatpush1.msra.mxu0 0.0
        %729 = vmatprep.subr.mxu0 0.0
        %730 = vmatpush1.msra.mxu0 0.0
        %731 = vmatprep.subr.mxu0 0.0
        %732 = vmatpush1.msra.mxu0 0.0
        %733 = vmatprep.subr.mxu0 0.0
        %734 = vmatpush1.msra.mxu0 0.0
        %735 = vmatprep.subr.mxu0 0.0
        %736 = vmatpush1.msra.mxu0 0.0
        %737 = vmatprep.subr.mxu0 0.0
        %738 = vmatpush1.msra.mxu0 0.0
        %739 = vmatprep.subr.mxu0 0.0
        %740 = vmatpush1.msra.mxu0 0.0
        %741 = vmatprep.subr.mxu0 0.0
        %742 = vmatpush1.msra.mxu0 0.0
        %743 = vmatprep.subr.mxu0 0.0
        %744 = vmatpush1.msra.mxu0 0.0
        %745 = vmatprep.subr.mxu0 0.0
        %746 = vmatpush1.msra.mxu0 0.0
        %747 = vmatprep.subr.mxu0 0.0
        %748 = vmatpush1.msra.mxu0 0.0
        %749 = vmatprep.subr.mxu0 0.0
        %750 = vmatpush1.msra.mxu0 0.0
        %751 = vmatprep.subr.mxu0 0.0
        %752 = vmatpush1.msra.mxu0 0.0
        %753 = vmatprep.subr.mxu0 0.0
        %754 = vmatpush1.msra.mxu0 0.0
        %755 = vmatprep.subr.mxu0 0.0
        %756 = vmatpush1.msra.mxu0 0.0
        %757 = vmatprep.subr.mxu0 0.0
        %758 = vmatpush1.msra.mxu0 0.0
        %759 = vmatprep.subr.mxu0 0.0
        %760 = vmatpush1.msra.mxu0 0.0
        %761 = vmatprep.subr.mxu0 0.0
        %762 = vmatpush1.msra.mxu0 0.0
        %763 = vmatprep.subr.mxu0 0.0
        %764 = vmatpush1.msra.mxu0 0.0
        %765 = vmatprep.subr.mxu0 0.0
        %766 = vmatpush1.msra.mxu0 0.0
        %767 = vmatprep.mubr.f32.mxu0 0.0
        %768 = vmatmul.mubr.f32.gmra.mrb[0].mxu0 %v698
        %v769 = vpop.f32.mrb[0].mxu0
        %v770 = vadd.f32 0.0, %v769
        %v771 = vpop.f32.mrb[0].mxu0
        %v772 = vadd.f32 0.0, %v771
        %773 = vmatprep.mubr.f32.mxu0 0.0
        %774 = vmatmul.mubr.f32.gmra.mrb[0].mxu0 %v701
        %v775 = vpop.f32.mrb[0].mxu0
        %v776 = vadd.f32 0.0, %v775
        %v777 = vpop.f32.mrb[0].mxu0
        %v778 = vadd.f32 0.0, %v777
        %779 = vdwg.mxu0
        %780 = vst [vmem:[#allocation2] sm:$0xff] %v770
        %781 = vst [vmem:[#allocation2 + $0x8] sm:$0xff] %v772
        %782 = vst [vmem:[#allocation2 + $0x10] sm:$0xff] %v776
        %783 = vst [vmem:[#allocation2 + $0x18] sm:$0xff] %v778
        %s784 = scalar_lea.vmem [#allocation9], 256
        %v785 = vld [vmem:[%s784] sm:$0xff]
        %v786 = vld [vmem:[%s784 + $0x8] sm:$0xff]
        %v787 = vld [vmem:[%s784 + $0x10] sm:$0xff]
        %v788 = vld [vmem:[%s784 + $0x18] sm:$0xff]
        %v789 = vld [vmem:[%s784 + $0x20] sm:$0xff]
        %v790 = vld [vmem:[%s784 + $0x28] sm:$0xff]
        %v791 = vld [vmem:[%s784 + $0x30] sm:$0xff]
        %v792 = vld [vmem:[%s784 + $0x38] sm:$0xff]
        %v793 = vld [vmem:[%s784 + $0x40] sm:$0xff]
        %v794 = vld [vmem:[%s784 + $0x48] sm:$0xff]
        %v795 = vld [vmem:[%s784 + $0x50] sm:$0xff]
        %v796 = vld [vmem:[%s784 + $0x58] sm:$0xff]
        %v797 = vld [vmem:[%s784 + $0x60] sm:$0xff]
        %v798 = vld [vmem:[%s784 + $0x68] sm:$0xff]
        %v799 = vld [vmem:[%s784 + $0x70] sm:$0xff]
        %v800 = vld [vmem:[%s784 + $0x78] sm:$0xff]
        %v801 = vld [vmem:[#allocation2] sm:$0xff]
        %v802 = vld [vmem:[#allocation2 + $0x10] sm:$0xff]
        %v803 = vld [vmem:[#allocation3] sm:$0xff]
        %v804 = vld [vmem:[#allocation3 + $0x10] sm:$0xff]
        %805 = vmatprep.subr.mxu0 0.0
        %806 = vmatpush1.msra.mxu0 %v785
        %807 = vmatprep.subr.mxu0 0.0
        %808 = vmatpush1.msra.mxu0 %v786
        %809 = vmatprep.subr.mxu0 0.0
        %810 = vmatpush1.msra.mxu0 %v787
        %811 = vmatprep.subr.mxu0 0.0
        %812 = vmatpush1.msra.mxu0 %v788
        %813 = vmatprep.subr.mxu0 0.0
        %814 = vmatpush1.msra.mxu0 %v789
        %815 = vmatprep.subr.mxu0 0.0
        %816 = vmatpush1.msra.mxu0 %v790
        %817 = vmatprep.subr.mxu0 0.0
        %818 = vmatpush1.msra.mxu0 %v791
        %819 = vmatprep.subr.mxu0 0.0
        %820 = vmatpush1.msra.mxu0 %v792
        %821 = vmatprep.subr.mxu0 0.0
        %822 = vmatpush1.msra.mxu0 %v793
        %823 = vmatprep.subr.mxu0 0.0
        %824 = vmatpush1.msra.mxu0 %v794
        %825 = vmatprep.subr.mxu0 0.0
        %826 = vmatpush1.msra.mxu0 %v795
        %827 = vmatprep.subr.mxu0 0.0
        %828 = vmatpush1.msra.mxu0 %v796
        %829 = vmatprep.subr.mxu0 0.0
        %830 = vmatpush1.msra.mxu0 %v797
        %831 = vmatprep.subr.mxu0 0.0
        %832 = vmatpush1.msra.mxu0 %v798
        %833 = vmatprep.subr.mxu0 0.0
        %834 = vmatpush1.msra.mxu0 %v799
        %835 = vmatprep.subr.mxu0 0.0
        %836 = vmatpush1.msra.mxu0 %v800
        %837 = vmatprep.subr.mxu0 0.0
        %838 = vmatpush1.msra.mxu0 0.0
        %839 = vmatprep.subr.mxu0 0.0
        %840 = vmatpush1.msra.mxu0 0.0
        %841 = vmatprep.subr.mxu0 0.0
        %842 = vmatpush1.msra.mxu0 0.0
        %843 = vmatprep.subr.mxu0 0.0
        %844 = vmatpush1.msra.mxu0 0.0
        %845 = vmatprep.subr.mxu0 0.0
        %846 = vmatpush1.msra.mxu0 0.0
        %847 = vmatprep.subr.mxu0 0.0
        %848 = vmatpush1.msra.mxu0 0.0
        %849 = vmatprep.subr.mxu0 0.0
        %850 = vmatpush1.msra.mxu0 0.0
        %851 = vmatprep.subr.mxu0 0.0
        %852 = vmatpush1.msra.mxu0 0.0
        %853 = vmatprep.subr.mxu0 0.0
        %854 = vmatpush1.msra.mxu0 0.0
        %855 = vmatprep.subr.mxu0 0.0
        %856 = vmatpush1.msra.mxu0 0.0
        %857 = vmatprep.subr.mxu0 0.0
        %858 = vmatpush1.msra.mxu0 0.0
        %859 = vmatprep.subr.mxu0 0.0
        %860 = vmatpush1.msra.mxu0 0.0
        %861 = vmatprep.subr.mxu0 0.0
        %862 = vmatpush1.msra.mxu0 0.0
        %863 = vmatprep.subr.mxu0 0.0
        %864 = vmatpush1.msra.mxu0 0.0
        %865 = vmatprep.subr.mxu0 0.0
        %866 = vmatpush1.msra.mxu0 0.0
        %867 = vmatprep.subr.mxu0 0.0
        %868 = vmatpush1.msra.mxu0 0.0
        %869 = vmatprep.mubr.f32.mxu0 0.0
        %870 = vmatmul.mubr.f32.gmra.mrb[0].mxu0 %v801
        %v871 = vpop.f32.mrb[0].mxu0
        %v872 = vadd.f32 0.0, %v871
        %v873 = vpop.f32.mrb[0].mxu0
        %874 = vmatprep.mubr.f32.mxu0 0.0
        %875 = vmatmul.mubr.f32.gmra.mrb[0].mxu0 %v802
        %v876 = vpop.f32.mrb[0].mxu0
        %v877 = vadd.f32 0.0, %v876
        %v878 = vpop.f32.mrb[0].mxu0
        %879 = vdwg.mxu0
        %v880 = vadd.f32 %v803, %v872
        %v881 = vadd.f32 %v804, %v877
        %882 = vst [vmem:[#allocation3] sm:$0xff] %v880
        %883 = vst [vmem:[#allocation3 + $0x10] sm:$0xff] %v881
        %v884 = vld [vmem:[#allocation2 + $0x8] sm:$0xff]
        %v885 = vld [vmem:[#allocation2 + $0x18] sm:$0xff]
        %v886 = vld [vmem:[#allocation3 + $0x8] sm:$0xff]
        %v887 = vld [vmem:[#allocation3 + $0x18] sm:$0xff]
        %888 = vmatprep.subr.mxu0 0.0
        %889 = vmatpush1.msra.mxu0 %v785
        %890 = vmatprep.subr.mxu0 0.0
        %891 = vmatpush1.msra.mxu0 %v786
        %892 = vmatprep.subr.mxu0 0.0
        %893 = vmatpush1.msra.mxu0 %v787
        %894 = vmatprep.subr.mxu0 0.0
        %895 = vmatpush1.msra.mxu0 %v788
        %896 = vmatprep.subr.mxu0 0.0
        %897 = vmatpush1.msra.mxu0 %v789
        %898 = vmatprep.subr.mxu0 0.0
        %899 = vmatpush1.msra.mxu0 %v790
        %900 = vmatprep.subr.mxu0 0.0
        %901 = vmatpush1.msra.mxu0 %v791
        %902 = vmatprep.subr.mxu0 0.0
        %903 = vmatpush1.msra.mxu0 %v792
        %904 = vmatprep.subr.mxu0 0.0
        %905 = vmatpush1.msra.mxu0 %v793
        %906 = vmatprep.subr.mxu0 0.0
        %907 = vmatpush1.msra.mxu0 %v794
        %908 = vmatprep.subr.mxu0 0.0
        %909 = vmatpush1.msra.mxu0 %v795
        %910 = vmatprep.subr.mxu0 0.0
        %911 = vmatpush1.msra.mxu0 %v796
        %912 = vmatprep.subr.mxu0 0.0
        %913 = vmatpush1.msra.mxu0 %v797
        %914 = vmatprep.subr.mxu0 0.0
        %915 = vmatpush1.msra.mxu0 %v798
        %916 = vmatprep.subr.mxu0 0.0
        %917 = vmatpush1.msra.mxu0 %v799
        %918 = vmatprep.subr.mxu0 0.0
        %919 = vmatpush1.msra.mxu0 %v800
        %920 = vmatprep.subr.mxu0 0.0
        %921 = vmatpush1.msra.mxu0 0.0
        %922 = vmatprep.subr.mxu0 0.0
        %923 = vmatpush1.msra.mxu0 0.0
        %924 = vmatprep.subr.mxu0 0.0
        %925 = vmatpush1.msra.mxu0 0.0
        %926 = vmatprep.subr.mxu0 0.0
        %927 = vmatpush1.msra.mxu0 0.0
        %928 = vmatprep.subr.mxu0 0.0
        %929 = vmatpush1.msra.mxu0 0.0
        %930 = vmatprep.subr.mxu0 0.0
        %931 = vmatpush1.msra.mxu0 0.0
        %932 = vmatprep.subr.mxu0 0.0
        %933 = vmatpush1.msra.mxu0 0.0
        %934 = vmatprep.subr.mxu0 0.0
        %935 = vmatpush1.msra.mxu0 0.0
        %936 = vmatprep.subr.mxu0 0.0
        %937 = vmatpush1.msra.mxu0 0.0
        %938 = vmatprep.subr.mxu0 0.0
        %939 = vmatpush1.msra.mxu0 0.0
        %940 = vmatprep.subr.mxu0 0.0
        %941 = vmatpush1.msra.mxu0 0.0
        %942 = vmatprep.subr.mxu0 0.0
        %943 = vmatpush1.msra.mxu0 0.0
        %944 = vmatprep.subr.mxu0 0.0
        %945 = vmatpush1.msra.mxu0 0.0
        %946 = vmatprep.subr.mxu0 0.0
        %947 = vmatpush1.msra.mxu0 0.0
        %948 = vmatprep.subr.mxu0 0.0
        %949 = vmatpush1.msra.mxu0 0.0
        %950 = vmatprep.subr.mxu0 0.0
        %951 = vmatpush1.msra.mxu0 0.0
        %952 = vmatprep.mubr.f32.mxu0 0.0
        %953 = vmatmul.mubr.f32.gmra.mrb[0].mxu0 %v884
        %v954 = vpop.f32.mrb[0].mxu0
        %v955 = vadd.f32 0.0, %v954
        %v956 = vpop.f32.mrb[0].mxu0
        %957 = vmatprep.mubr.f32.mxu0 0.0
        %958 = vmatmul.mubr.f32.gmra.mrb[0].mxu0 %v885
        %v959 = vpop.f32.mrb[0].mxu0
        %v960 = vadd.f32 0.0, %v959
        %v961 = vpop.f32.mrb[0].mxu0
        %962 = vdwg.mxu0
        %v963 = vadd.f32 %v886, %v955
        %v964 = vadd.f32 %v887, %v960
        %965 = vst [vmem:[#allocation3 + $0x8] sm:$0xff] %v963
        %966 = vst [vmem:[#allocation3 + $0x18] sm:$0xff] %v964
        %v967 = vld [vmem:[#allocation3] sm:$0xff]
        %v968 = vld [vmem:[#allocation3 + $0x8] sm:$0xff]
        %v969 = vld [vmem:[#allocation3 + $0x10] sm:$0xff]
        %v970 = vld [vmem:[#allocation3 + $0x18] sm:$0xff]
        %v971 = vmax.f32 %v967, 0.0
        %v972 = vmax.f32 %v968, 0.0
        %v973 = vmax.f32 %v969, 0.0
        %v974 = vmax.f32 %v970, 0.0
        %975 = vst [vmem:[%s217] sm:$0xff] %v971
        %976 = vst [vmem:[%s217 + $0x8] sm:$0xff] %v972
        %977 = vst [vmem:[%s217 + $0x10] sm:$0xff] %v973
        %978 = vst [vmem:[%s217 + $0x18] sm:$0xff] %v974
        %s979 = sand.u32 %s97, 1
        %s980 = scalar_lea.sflag [#allocation6], %s979
        %s981 = sand.u32 %s97, 1
        %s982 = smul.addr %s981, 32
        %s983 = scalar_lea.vmem [#allocation10], %s982
        // Predicated region
        $region45: #{tpu_custom_call.1} parent=31 // pred_check
          %p984 = pneg %p107
        $region46: #{tpu_custom_call.1} parent=31 // pred_check_branch
          %986 = sbr.rel (%p984) target = $region48
        $region47: #{tpu_custom_call.1} parent=31 // pred_region
          %s987 = smul.u32 2, %s21
          %s989 = ssub.s32 512, 512
          %990 = vsyncadd %s980, %s989
          %s991 = smul.addr %s987, 128
          %s992 = scalar_lea.hbm %s3, %s991
          %s993 = sshll.u32 %s983, 4
          %s994 = int_to_ptr.vmem [resolvable:$true] %s993
          %999 = dma.vmem_to_hbm [thread:$0]  %s994, 512, %s992, %s980, 256, 1024, 16
        $region48: #{tpu_custom_call.1} parent=31 // pred_fallthru
          _
      $region32: #{tpu_custom_call.1} parent=5 // pred_fallthru
        _
      %p1000 = scmp.le.s32.totalorder 2, %s16
      // Predicated region
      $region49: #{tpu_custom_call.1} parent=5 // pred_check
        %p1001 = pneg %p1000
      $region50: #{tpu_custom_call.1} parent=5 // pred_check_branch
        %1003 = sbr.rel (%p1001) target = $region52
      $region51: #{tpu_custom_call.1} parent=5 // pred_region
        %s1004 = ssub.s32 %s16, 2
        // Predicated region
        $region53: #{tpu_custom_call.1} parent=51 // pred_check
          %p1005 = pneg %p113
        $region54: #{tpu_custom_call.1} parent=51 // pred_check_branch
          %1007 = sbr.rel (%p1005) target = $region56
        $region55: #{tpu_custom_call.1} parent=51 // pred_region
          %s1008 = sand.u32 %s98, 1
          %s1009 = scalar_lea.sflag [#allocation6], %s1008
          %s1010 = sand.u32 %s98, 1
          %s1011 = smul.addr %s1010, 32
          %s1012 = scalar_lea.vmem [#allocation10], %s1011
          %1013 = dma.done %s1009, 512
        $region56: #{tpu_custom_call.1} parent=51 // pred_fallthru
          _
      $region52: #{tpu_custom_call.1} parent=5 // pred_fallthru
        _
    $region6: #{tpu_custom_call.1} parent=1 // loop_footer
      %s20 = sadd.s32 1, %s16
    $region7: #{tpu_custom_call.1} parent=1 // loop_footer_branch
      %15 = sbr.rel target = $region3
    $region8: #{tpu_custom_call.1} parent=1 // loop_exit
      _
    %1014 = vsyncpa [#allocation5], 1
    %s1015 = scalar_lea.sflag [#allocation5], 1
    %1016 = vsyncpa %s1015, 1
    %1017 = vsyncpa [#allocation8], 1
    %s1018 = scalar_lea.sflag [#allocation8], 1
    %1019 = vsyncpa %s1018, 1
    %1020 = vsyncpa [#allocation6], 1
    %s1021 = scalar_lea.sflag [#allocation6], 1
    %1022 = vsyncpa %s1021, 1

</llo_original>
